<compile_context>
chip_gen: v7x
topology: tpu7x:2x2x1
jax: 0.10.0
libtpu: 0.0.40
codegen_flags: <defaults>
</compile_context>

<pallas_src>
import functools

import jax
import jax.numpy as jnp
from jax import lax
from jax.experimental import pallas as pl
from jax.experimental.pallas import tpu as pltpu


# ----------------------------- helpers (traced inside kernels) -----------------

def _layer_norm(x, gamma, beta, eps=1e-5):
    mean = jnp.mean(x, axis=-1, keepdims=True)
    var = jnp.mean((x - mean) ** 2, axis=-1, keepdims=True)
    return (x - mean) * lax.rsqrt(var + eps) * gamma + beta


def _softmax_last(x):
    m = jnp.max(x, axis=-1, keepdims=True)
    e = jnp.exp(x - m)
    return e * pl.reciprocal(jnp.sum(e, axis=-1, keepdims=True), approx=True)


# ----------------------------- fused encoder kernel ----------------------------
# grid = (batch_tiles, num_layers).  The activation carry lives in a VMEM
# scratch; per-layer weight slices stream (double-buffered) via BlockSpec.

def bert_encoder_kernel(vl_ref, x_ref,
                        wq_ref, bq_ref, wk_ref, bk_ref, wv_ref, bv_ref,
                        wo_ref, bo_ref, g1_ref, be1_ref,
                        w1_ref, bf1_ref, w2_ref, bf2_ref, g2_ref, be2_ref,
                        o_ref, xs_ref, *, num_heads):
    b = pl.program_id(0)          # batch-tile index
    l = pl.program_id(1)          # layer index (sequential carry)

    @pl.when(l == 0)
    def _():
        xs_ref[...] = x_ref[...]

    x = xs_ref[...]                                    # (bt, S, H) float32
    bt, S, H = x.shape
    nh = num_heads
    hd = H // nh
    M = bt * S

    xm_f32 = x.reshape(M, H)
    xm = xm_f32.astype(jnp.bfloat16)

    # ---- Q/K/V projections: single 2-D MXU matmuls over M = bt*S rows.
    #      (1/sqrt(hd) is folded into wq/bq outside the kernel.)
    q = jnp.dot(xm, wq_ref[0], preferred_element_type=jnp.float32) + bq_ref[0]
    k = jnp.dot(xm, wk_ref[0], preferred_element_type=jnp.float32) + bk_ref[0]
    v = jnp.dot(xm, wv_ref[0], preferred_element_type=jnp.float32) + bv_ref[0]

    q3 = q.reshape(bt, S, H).astype(jnp.bfloat16)
    k3 = k.reshape(bt, S, H).astype(jnp.bfloat16)
    v3 = v.reshape(bt, S, H).astype(jnp.bfloat16)

    # ---- key-validity mask rebuilt in-kernel from SMEM valid_lens ----
    col = lax.broadcasted_iota(jnp.int32, (1, 1, S), 2)
    keep_rows = []
    for i in range(bt):                                # bt is a small static int
        vl_i = vl_ref[b * bt + i]
        keep_rows.append(jnp.where(col < vl_i, 1.0, 0.0).astype(jnp.float32))
    keep = keep_rows[0] if bt == 1 else jnp.concatenate(keep_rows, axis=0)  # (bt,1,S)

    # ---- per-head attention (heads = static lane slices of the H axis) ----
    ctx_heads = []
    for h in range(nh):
        sl = slice(h * hd, (h + 1) * hd)
        s_h = jnp.einsum('bqd,bkd->bqk', q3[:, :, sl], k3[:, :, sl],
                         preferred_element_type=jnp.float32)        # (bt, S, S)
        s_h = jnp.where(keep > 0.5, s_h, -1e6)                      # d2l mask semantics
        p_h = _softmax_last(s_h).astype(jnp.bfloat16)
        ctx_heads.append(jnp.einsum('bqk,bkd->bqd', p_h, v3[:, :, sl],
                                    preferred_element_type=jnp.float32))
    ctx = ctx_heads[0] if nh == 1 else jnp.concatenate(ctx_heads, axis=-1)  # (bt,S,H)

    # ---- concat-heads output projection: one (M, H) @ (H, H) matmul ----
    attn = jnp.dot(ctx.reshape(M, H).astype(jnp.bfloat16), wo_ref[0],
                   preferred_element_type=jnp.float32) + bo_ref[0]          # (M, H)

    # ---- AddNorm 1 (dropout = identity) ----
    y = _layer_norm(xm_f32 + attn, g1_ref[0], be1_ref[0])                   # (M, H)

    # ---- position-wise FFN: plain 2-D matmuls ----
    h1 = jnp.maximum(jnp.dot(y.astype(jnp.bfloat16), w1_ref[0],
                             preferred_element_type=jnp.float32) + bf1_ref[0], 0.0)
    ffn = jnp.dot(h1.astype(jnp.bfloat16), w2_ref[0],
                  preferred_element_type=jnp.float32) + bf2_ref[0]

    # ---- AddNorm 2 + carry; HBM store only on the last layer ----
    out = _layer_norm(y + ffn, g2_ref[0], be2_ref[0]).reshape(bt, S, H)
    xs_ref[...] = out

    @pl.when(l == pl.num_programs(1) - 1)
    def _():
        o_ref[...] = out.astype(o_ref.dtype)


def _encoder_vmem_bytes(bt, S, H, F, nh):
    # resident activations: input block + carry scratch + output block (f32)
    act = 3 * bt * S * H * 4
    # one layer's weight slice (bf16 matmul weights + f32 biases / LN params),
    # double-buffered by the BlockSpec pipeline
    w_layer = (4 * H * H + 2 * H * F) * 2 + (6 * H + F) * 4
    # in-flight temporaries: q/k/v/ctx/ffn activations + per-head scores (f32)
    tmp = 6 * bt * S * H * 4 + 2 * bt * S * F * 4 + 2 * nh * bt * S * S * 4
    total = act + 2 * w_layer + tmp
    return int(min(128 * 1024 * 1024, max(16 * 1024 * 1024, 2 * total)))


def bert_encoder(x, valid_lens, blocks, num_heads, batch_tile=None):
    B, S, H = x.shape
    L = blocks['wq'].shape[0]
    F = blocks['w1'].shape[2]
    nh = num_heads
    assert H % nh == 0, "num_hiddens must be divisible by num_heads"
    hd = H // nh
    bt = B if batch_tile is None else batch_tile
    assert B % bt == 0

    # fold the attention scale into the query projection (free)
    scale = 1.0 / (hd ** 0.5)
    wq_s = (blocks['wq'].astype(jnp.float32) * scale).astype(blocks['wq'].dtype)
    bq_s = blocks['bq'] * scale

    weights = [wq_s, bq_s, blocks['wk'], blocks['bk'], blocks['wv'], blocks['bv'],
               blocks['wo'], blocks['bo'], blocks['g1'], blocks['be1'],
               blocks['w1'], blocks['bf1'], blocks['w2'], blocks['bf2'],
               blocks['g2'], blocks['be2']]

    def per_layer(a):    # stream one layer slice per grid step (double-buffered)
        nd = a.ndim
        return pl.BlockSpec((1,) + a.shape[1:],
                            lambda b, l, vl: (l,) + (0,) * (nd - 1))

    x_spec = pl.BlockSpec((bt, S, H), lambda b, l, vl: (b, 0, 0))
    out_spec = pl.BlockSpec((bt, S, H), lambda b, l, vl: (b, 0, 0))

    grid_spec = pltpu.PrefetchScalarGridSpec(
        num_scalar_prefetch=1,                 # valid_lens -> SMEM
        grid=(B // bt, L),
        in_specs=[x_spec] + [per_layer(a) for a in weights],
        out_specs=out_spec,
        scratch_shapes=[pltpu.VMEM((bt, S, H), jnp.float32)],
    )
    kernel = functools.partial(bert_encoder_kernel, num_heads=nh)
    return pl.pallas_call(
        kernel,
        grid_spec=grid_spec,
        out_shape=jax.ShapeDtypeStruct((B, S, H), jnp.float32),
        compiler_params=pltpu.CompilerParams(
            dimension_semantics=("parallel", "arbitrary"),   # batch tiles || layers seq
            vmem_limit_bytes=_encoder_vmem_bytes(bt, S, H, F, nh)),
    )(valid_lens.astype(jnp.int32), x, *weights)


# ----------------------------- MaskLM MLP kernel --------------------------------
# grid over vocab tiles; the shared Linear+ReLU+LayerNorm bottleneck is computed
# once (grid step 0) into a VMEM scratch and reused for every vocab tile.

def mlm_kernel(x_ref, w1_ref, b1_ref, g_ref, be_ref, w2_ref, b2_ref, o_ref, h_ref):
    @pl.when(pl.program_id(0) == 0)
    def _():
        h = jnp.dot(x_ref[...].astype(jnp.bfloat16), w1_ref[...],
                    preferred_element_type=jnp.float32) + b1_ref[...]
        h_ref[...] = _layer_norm(jnp.maximum(h, 0.0), g_ref[...], be_ref[...])
    o_ref[...] = (jnp.dot(h_ref[...].astype(jnp.bfloat16), w2_ref[...],
                          preferred_element_type=jnp.float32)
                  + b2_ref[...]).astype(o_ref.dtype)


def mlm_mlp(x, p, vocab_tile=512):
    N, H = x.shape
    V = p['w2'].shape[1]
    tv = min(vocab_tile, V)
    assert V % tv == 0
    grid_spec = pltpu.PrefetchScalarGridSpec(
        num_scalar_prefetch=0,
        grid=(V // tv,),
        in_specs=[pl.BlockSpec((N, H), lambda j: (0, 0)),
                  pl.BlockSpec((H, H), lambda j: (0, 0)),
                  pl.BlockSpec((1, H), lambda j: (0, 0)),
                  pl.BlockSpec((1, H), lambda j: (0, 0)),
                  pl.BlockSpec((1, H), lambda j: (0, 0)),
                  pl.BlockSpec((H, tv), lambda j: (0, j)),
                  pl.BlockSpec((1, tv), lambda j: (0, j))],
        out_specs=pl.BlockSpec((N, tv), lambda j: (0, j)),
        scratch_shapes=[pltpu.VMEM((N, H), jnp.float32)],
    )
    return pl.pallas_call(
        mlm_kernel,
        grid_spec=grid_spec,
        out_shape=jax.ShapeDtypeStruct((N, V), jnp.float32),
        compiler_params=pltpu.CompilerParams(dimension_semantics=("arbitrary",)),
    )(x, p['w1'], p['b1'], p['g'], p['be'], p['w2'], p['b2'])


# ----------------------------- hidden + NSP kernel -------------------------------

def nsp_kernel(x_ref, wh_ref, bh_ref, wn_ref, bn_ref, o_ref):
    x = x_ref[...].astype(jnp.bfloat16)
    h = jnp.tanh(jnp.dot(x, wh_ref[...], preferred_element_type=jnp.float32) + bh_ref[...])
    o_ref[...] = (jnp.dot(h.astype(jnp.bfloat16), wn_ref[...],
                          preferred_element_type=jnp.float32)
                  + bn_ref[...]).astype(o_ref.dtype)


def nsp_head(cls_x, hidden_p, nsp_p, lane_pad=128):
    # Pad the 2-class output to 128 lanes so the store is lane-dense; slice outside.
    B = cls_x.shape[0]
    H, C = nsp_p['w'].shape
    wn = jnp.zeros((H, lane_pad), nsp_p['w'].dtype).at[:, :C].set(nsp_p['w'])
    bn = jnp.zeros((1, lane_pad), jnp.float32).at[:, :C].set(nsp_p['b'])
    out = pl.pallas_call(
        nsp_kernel,
        out_shape=jax.ShapeDtypeStruct((B, lane_pad), jnp.float32),
    )(cls_x, hidden_p['w'], hidden_p['b'], wn, bn)
    return out[:, :C]


# ----------------------------- parameter init ------------------------------------
# Weights (MXU operands) stored in bf16; biases / LayerNorm params / embeddings in f32.

def init_params(key, vocab_size, num_hiddens, ffn_num_hiddens, num_layers, max_len):
    H, F, L = num_hiddens, ffn_num_hiddens, num_layers
    ks = jax.random.split(key, 13)

    def w(k, shape):
        return (jax.random.normal(k, shape, jnp.float32) * 0.02).astype(jnp.bfloat16)

    params = {
        'tok_emb': jax.random.normal(ks[0], (vocab_size, H), jnp.float32) * 0.02,
        'seg_emb': jax.random.normal(ks[1], (2, H), jnp.float32) * 0.02,
        'pos_emb': jax.random.normal(ks[2], (1, max_len, H), jnp.float32) * 0.02,
        'blocks': {
            'wq': w(ks[3], (L, H, H)), 'bq': jnp.zeros((L, 1, H), jnp.float32),
            'wk': w(ks[4], (L, H, H)), 'bk': jnp.zeros((L, 1, H), jnp.float32),
            'wv': w(ks[5], (L, H, H)), 'bv': jnp.zeros((L, 1, H), jnp.float32),
            'wo': w(ks[6], (L, H, H)), 'bo': jnp.zeros((L, 1, H), jnp.float32),
            'g1': jnp.ones((L, 1, H), jnp.float32), 'be1': jnp.zeros((L, 1, H), jnp.float32),
            'w1': w(ks[7], (L, H, F)), 'bf1': jnp.zeros((L, 1, F), jnp.float32),
            'w2': w(ks[8], (L, F, H)), 'bf2': jnp.zeros((L, 1, H), jnp.float32),
            'g2': jnp.ones((L, 1, H), jnp.float32), 'be2': jnp.zeros((L, 1, H), jnp.float32),
        },
        'mlm': {
            'w1': w(ks[9], (H, H)), 'b1': jnp.zeros((1, H), jnp.float32),
            'g': jnp.ones((1, H), jnp.float32), 'be': jnp.zeros((1, H), jnp.float32),
            'w2': w(ks[10], (H, vocab_size)), 'b2': jnp.zeros((1, vocab_size), jnp.float32),
        },
        'hidden': {'w': w(ks[11], (H, H)), 'b': jnp.zeros((1, H), jnp.float32)},
        'nsp': {'w': w(ks[12], (H, 2)), 'b': jnp.zeros((1, 2), jnp.float32)},
    }
    return params


# ----------------------------- full forward ---------------------------------------

def bert_forward(params, tokens, segments, valid_lens=None, pred_positions=None,
                 num_heads=2, batch_tile=None):
    B, S = tokens.shape
    H = params['tok_emb'].shape[1]
    assert H % num_heads == 0

    if valid_lens is None:
        valid_lens = jnp.full((B,), S, dtype=jnp.int32)
    valid_lens = valid_lens.astype(jnp.int32)

    # embeddings (gather glue in plain JAX)
    x = params['tok_emb'][tokens] + params['seg_emb'][segments]
    x = (x + params['pos_emb'][:, :S, :]).astype(jnp.float32)

    encoded_X = bert_encoder(x, valid_lens, params['blocks'], num_heads,
                             batch_tile=batch_tile)

    mlm_Y_hat = None
    if pred_positions is not None:
        P = pred_positions.shape[1]
        batch_idx = jnp.repeat(jnp.arange(B), P)
        masked_X = encoded_X[batch_idx, pred_positions.reshape(-1)]   # (B*P, H)
        mlm_Y_hat = mlm_mlp(masked_X, params['mlm']).reshape(B, P, -1)

    cls = encoded_X[:, 0, :]
    nsp_Y_hat = nsp_head(cls, params['hidden'], params['nsp'])
    return encoded_X, mlm_Y_hat, nsp_Y_hat


# ----------------------------- main ------------------------------------------------

if __name__ == "__main__":
    vocab_size = 128
    num_hiddens = 32
    ffn_num_hiddens = 64
    num_heads = 2
    num_layers = 2
    max_len = 64
    B, S = 2, 8

    root = jax.random.PRNGKey(0)
    pkey, tkey = jax.random.split(root)
    params = init_params(pkey, vocab_size, num_hiddens, ffn_num_hiddens,
                         num_layers, max_len)

    tokens = jax.random.randint(tkey, (B, S), 0, vocab_size, dtype=jnp.int32)
    segments = jnp.array([[0, 0, 0, 0, 1, 1, 1, 1],
                          [0, 0, 0, 1, 1, 1, 1, 1]], dtype=jnp.int32)
    valid_lens = jnp.array([8, 6], dtype=jnp.int32)
    pred_positions = jnp.array([[1, 5, 2], [6, 1, 5]], dtype=jnp.int32)

    # batch_tile=1 exercises the leading "parallel" grid axis (2 batch tiles).
    encoded_X, mlm_Y_hat, nsp_Y_hat = bert_forward(
        params, tokens, segments, valid_lens, pred_positions,
        num_heads=num_heads, batch_tile=1)

    jax.block_until_ready((encoded_X, mlm_Y_hat, nsp_Y_hat))
    assert encoded_X.shape == (B, S, num_hiddens)
    assert mlm_Y_hat.shape == (B, 3, vocab_size)
    assert nsp_Y_hat.shape == (B, 2)
    print("KERNEL_OK")
</pallas_src>

<mosaic_0001>
module attributes {stable_mosaic.version = 11 : i64} {
  func.func @bert_encoder_kernel(%arg0: i32, %arg1: i32, %arg2: memref<2xi32, #tpu.memory_space<smem>>, %arg3: memref<1x8x32xf32, #tpu.memory_space<vmem>>, %arg4: memref<1x32x32xbf16, #tpu.memory_space<vmem>>, %arg5: memref<1x1x32xf32, #tpu.memory_space<vmem>>, %arg6: memref<1x32x32xbf16, #tpu.memory_space<vmem>>, %arg7: memref<1x1x32xf32, #tpu.memory_space<vmem>>, %arg8: memref<1x32x32xbf16, #tpu.memory_space<vmem>>, %arg9: memref<1x1x32xf32, #tpu.memory_space<vmem>>, %arg10: memref<1x32x32xbf16, #tpu.memory_space<vmem>>, %arg11: memref<1x1x32xf32, #tpu.memory_space<vmem>>, %arg12: memref<1x1x32xf32, #tpu.memory_space<vmem>>, %arg13: memref<1x1x32xf32, #tpu.memory_space<vmem>>, %arg14: memref<1x32x64xbf16, #tpu.memory_space<vmem>>, %arg15: memref<1x1x64xf32, #tpu.memory_space<vmem>>, %arg16: memref<1x64x32xbf16, #tpu.memory_space<vmem>>, %arg17: memref<1x1x32xf32, #tpu.memory_space<vmem>>, %arg18: memref<1x1x32xf32, #tpu.memory_space<vmem>>, %arg19: memref<1x1x32xf32, #tpu.memory_space<vmem>>, %arg20: memref<1x8x32xf32, #tpu.memory_space<vmem>>, %arg21: memref<1x8x32xf32, #tpu.memory_space<vmem>>) attributes {dimension_semantics = [#tpu.dimension_semantics<parallel>, #tpu.dimension_semantics<arbitrary>], iteration_bounds = array<i64: 2, 2>, scalar_prefetch = 1 : i64, scratch_operands = 1 : i64, tpu.core_type = #tpu.core_type<tc>, window_params = [{transform_indices = @transform_0, window_bounds = array<i64: 1, 8, 32>}, {transform_indices = @transform_1, window_bounds = array<i64: 1, 32, 32>}, {transform_indices = @transform_2, window_bounds = array<i64: 1, 1, 32>}, {transform_indices = @transform_3, window_bounds = array<i64: 1, 32, 32>}, {transform_indices = @transform_4, window_bounds = array<i64: 1, 1, 32>}, {transform_indices = @transform_5, window_bounds = array<i64: 1, 32, 32>}, {transform_indices = @transform_6, window_bounds = array<i64: 1, 1, 32>}, {transform_indices = @transform_7, window_bounds = array<i64: 1, 32, 32>}, {transform_indices = @transform_8, window_bounds = array<i64: 1, 1, 32>}, {transform_indices = @transform_9, window_bounds = array<i64: 1, 1, 32>}, {transform_indices = @transform_10, window_bounds = array<i64: 1, 1, 32>}, {transform_indices = @transform_11, window_bounds = array<i64: 1, 32, 64>}, {transform_indices = @transform_12, window_bounds = array<i64: 1, 1, 64>}, {transform_indices = @transform_13, window_bounds = array<i64: 1, 64, 32>}, {transform_indices = @transform_14, window_bounds = array<i64: 1, 1, 32>}, {transform_indices = @transform_15, window_bounds = array<i64: 1, 1, 32>}, {transform_indices = @transform_16, window_bounds = array<i64: 1, 1, 32>}, {transform_indices = @transform_17, window_bounds = array<i64: 1, 8, 32>}]} {
    %c0_i32 = arith.constant 0 : i32
    %0 = arith.cmpi eq, %arg1, %c0_i32 : i32
    %1 = arith.extui %0 : i1 to i32
    %c0_i32_0 = arith.constant 0 : i32
    %2 = arith.cmpi ne, %1, %c0_i32_0 : i32
    scf.if %2 {
      %c0_87 = arith.constant 0 : index
      %c0_88 = arith.constant 0 : index
      %c0_89 = arith.constant 0 : index
      %174 = vector.load %arg3[%c0_87, %c0_88, %c0_89] : memref<1x8x32xf32, #tpu.memory_space<vmem>>, vector<1x8x32xf32>
      %c0_90 = arith.constant 0 : index
      %c0_91 = arith.constant 0 : index
      %c0_92 = arith.constant 0 : index
      %175 = vector.load %arg21[%c0_90, %c0_91, %c0_92] : memref<1x8x32xf32, #tpu.memory_space<vmem>>, vector<1x8x32xf32>
      tpu.vector_store %arg21[%c0_90, %c0_91, %c0_92], %174 {strides = array<i32>} : memref<1x8x32xf32, #tpu.memory_space<vmem>>, vector<1x8x32xf32>,
    } else {
    }
    %c0 = arith.constant 0 : index
    %c0_1 = arith.constant 0 : index
    %c0_2 = arith.constant 0 : index
    %3 = vector.load %arg21[%c0, %c0_1, %c0_2] : memref<1x8x32xf32, #tpu.memory_space<vmem>>, vector<1x8x32xf32>
    %4 = vector.shape_cast %3 : vector<1x8x32xf32> to vector<8x32xf32>
    %5 = arith.truncf %4 : vector<8x32xf32> to vector<8x32xbf16>
    %c0_3 = arith.constant 0 : index
    %c0_4 = arith.constant 0 : index
    %c0_5 = arith.constant 0 : index
    %6 = vector.load %arg4[%c0_3, %c0_4, %c0_5] : memref<1x32x32xbf16, #tpu.memory_space<vmem>>, vector<1x32x32xbf16>
    %7 = vector.shape_cast %6 : vector<1x32x32xbf16> to vector<32x32xbf16>
    %cst = arith.constant dense<0.000000e+00> : vector<8x32xf32>
    %8 = tpu.matmul %5, %7, %cst {dimension_numbers = #tpu.dot_dimension_numbers<[1], [0], [0], [1], [0, 0, 1, 1], [], []>} : vector<8x32xbf16>, vector<32x32xbf16>, vector<8x32xf32> -> vector<8x32xf32>
    %c0_6 = arith.constant 0 : index
    %c0_7 = arith.constant 0 : index
    %c0_8 = arith.constant 0 : index
    %9 = vector.load %arg5[%c0_6, %c0_7, %c0_8] : memref<1x1x32xf32, #tpu.memory_space<vmem>>, vector<1x1x32xf32>
    %10 = vector.shape_cast %9 : vector<1x1x32xf32> to vector<1x32xf32>
    %11 = vector.broadcast %10 : vector<1x32xf32> to vector<8x32xf32>
    %12 = arith.addf %8, %11 : vector<8x32xf32>
    %c0_9 = arith.constant 0 : index
    %c0_10 = arith.constant 0 : index
    %c0_11 = arith.constant 0 : index
    %13 = vector.load %arg6[%c0_9, %c0_10, %c0_11] : memref<1x32x32xbf16, #tpu.memory_space<vmem>>, vector<1x32x32xbf16>
    %14 = vector.shape_cast %13 : vector<1x32x32xbf16> to vector<32x32xbf16>
    %cst_12 = arith.constant dense<0.000000e+00> : vector<8x32xf32>
    %15 = tpu.matmul %5, %14, %cst_12 {dimension_numbers = #tpu.dot_dimension_numbers<[1], [0], [0], [1], [0, 0, 1, 1], [], []>} : vector<8x32xbf16>, vector<32x32xbf16>, vector<8x32xf32> -> vector<8x32xf32>
    %c0_13 = arith.constant 0 : index
    %c0_14 = arith.constant 0 : index
    %c0_15 = arith.constant 0 : index
    %16 = vector.load %arg7[%c0_13, %c0_14, %c0_15] : memref<1x1x32xf32, #tpu.memory_space<vmem>>, vector<1x1x32xf32>
    %17 = vector.shape_cast %16 : vector<1x1x32xf32> to vector<1x32xf32>
    %18 = vector.broadcast %17 : vector<1x32xf32> to vector<8x32xf32>
    %19 = arith.addf %15, %18 : vector<8x32xf32>
    %c0_16 = arith.constant 0 : index
    %c0_17 = arith.constant 0 : index
    %c0_18 = arith.constant 0 : index
    %20 = vector.load %arg8[%c0_16, %c0_17, %c0_18] : memref<1x32x32xbf16, #tpu.memory_space<vmem>>, vector<1x32x32xbf16>
    %21 = vector.shape_cast %20 : vector<1x32x32xbf16> to vector<32x32xbf16>
    %cst_19 = arith.constant dense<0.000000e+00> : vector<8x32xf32>
    %22 = tpu.matmul %5, %21, %cst_19 {dimension_numbers = #tpu.dot_dimension_numbers<[1], [0], [0], [1], [0, 0, 1, 1], [], []>} : vector<8x32xbf16>, vector<32x32xbf16>, vector<8x32xf32> -> vector<8x32xf32>
    %c0_20 = arith.constant 0 : index
    %c0_21 = arith.constant 0 : index
    %c0_22 = arith.constant 0 : index
    %23 = vector.load %arg9[%c0_20, %c0_21, %c0_22] : memref<1x1x32xf32, #tpu.memory_space<vmem>>, vector<1x1x32xf32>
    %24 = vector.shape_cast %23 : vector<1x1x32xf32> to vector<1x32xf32>
    %25 = vector.broadcast %24 : vector<1x32xf32> to vector<8x32xf32>
    %26 = arith.addf %22, %25 : vector<8x32xf32>
    %27 = vector.shape_cast %12 : vector<8x32xf32> to vector<1x8x32xf32>
    %28 = arith.truncf %27 : vector<1x8x32xf32> to vector<1x8x32xbf16>
    %29 = vector.shape_cast %19 : vector<8x32xf32> to vector<1x8x32xf32>
    %30 = arith.truncf %29 : vector<1x8x32xf32> to vector<1x8x32xbf16>
    %31 = vector.shape_cast %26 : vector<8x32xf32> to vector<1x8x32xf32>
    %32 = arith.truncf %31 : vector<1x8x32xf32> to vector<1x8x32xbf16>
    %33 = tpu.iota {dimensions = array<i32: 2>} : vector<1x1x8xi32>
    %c1_i32 = arith.constant 1 : i32
    %34 = arith.muli %arg0, %c1_i32 : i32
    %c0_i32_23 = arith.constant 0 : i32
    %35 = arith.addi %34, %c0_i32_23 : i32
    %36 = arith.index_cast %35 : i32 to index
    %37 = memref.load %arg2[%36] : memref<2xi32, #tpu.memory_space<smem>>
    %38 = vector.broadcast %37 : i32 to vector<1x1x8xi32>
    %39 = arith.cmpi slt, %33, %38 : vector<1x1x8xi32>
    %cst_24 = arith.constant 1.000000e+00 : f32
    %cst_25 = arith.constant 0.000000e+00 : f32
    %40 = vector.broadcast %cst_24 : f32 to vector<1x1x8xf32>
    %41 = vector.broadcast %cst_25 : f32 to vector<1x1x8xf32>
    %42 = arith.select %39, %40, %41 : vector<1x1x8xi1>, vector<1x1x8xf32>
    %43 = vector.extract_strided_slice %28 {offsets = [0, 0, 0], sizes = [1, 8, 16], strides = [1, 1, 1]} : vector<1x8x32xbf16> to vector<1x8x16xbf16>
    %44 = vector.extract_strided_slice %30 {offsets = [0, 0, 0], sizes = [1, 8, 16], strides = [1, 1, 1]} : vector<1x8x32xbf16> to vector<1x8x16xbf16>
    "tpu.trace_start"() <{level = 10 : i32, message = "bqd,bkd->bqk"}> : () -> ()
    %cst_26 = arith.constant dense<0.000000e+00> : vector<1x8x8xf32>
    %45 = tpu.matmul %43, %44, %cst_26 {dimension_numbers = #tpu.dot_dimension_numbers<[2], [2], [1], [1], [0, 0, 0, 1, 1, 1], [0], [0]>} : vector<1x8x16xbf16>, vector<1x8x16xbf16>, vector<1x8x8xf32> -> vector<1x8x8xf32>
    %cst_27 = arith.constant 5.000000e-01 : f32
    "tpu.trace_stop"() : () -> ()
    %46 = vector.broadcast %cst_27 : f32 to vector<1x1x8xf32>
    %47 = arith.cmpf ogt, %42, %46 : vector<1x1x8xf32>
    %cst_28 = arith.constant -1.000000e+06 : f32
    %48 = vector.shape_cast %47 : vector<1x1x8xi1> to vector<1x1x8xi1>
    %49 = vector.broadcast %48 : vector<1x1x8xi1> to vector<1x8x8xi1>
    %50 = vector.broadcast %cst_28 : f32 to vector<1x8x8xf32>
    %51 = arith.select %49, %45, %50 : vector<1x8x8xi1>, vector<1x8x8xf32>
    %cst_29 = arith.constant dense<0xFF800000> : vector<1x8xf32>
    %52 = vector.multi_reduction <maximumf>, %51, %cst_29 [2] : vector<1x8x8xf32> to vector<1x8xf32>
    %53 = vector.shape_cast %52 : vector<1x8xf32> to vector<1x8x1xf32>
    %54 = vector.broadcast %53 : vector<1x8x1xf32> to vector<1x8x8xf32>
    %55 = arith.subf %51, %54 : vector<1x8x8xf32>
    %56 = math.exp %55 : vector<1x8x8xf32>
    %cst_30 = arith.constant dense<0.000000e+00> : vector<1x8xf32>
    %57 = vector.multi_reduction <add>, %56, %cst_30 [2] : vector<1x8x8xf32> to vector<1x8xf32>
    %58 = vector.shape_cast %57 : vector<1x8xf32> to vector<1x8x1xf32>
    %59 = tpu.reciprocal %58 {approx = true} : vector<1x8x1xf32> -> vector<1x8x1xf32>
    %60 = vector.broadcast %59 : vector<1x8x1xf32> to vector<1x8x8xf32>
    %61 = arith.mulf %56, %60 : vector<1x8x8xf32>
    %62 = arith.truncf %61 : vector<1x8x8xf32> to vector<1x8x8xbf16>
    %63 = vector.extract_strided_slice %32 {offsets = [0, 0, 0], sizes = [1, 8, 16], strides = [1, 1, 1]} : vector<1x8x32xbf16> to vector<1x8x16xbf16>
    "tpu.trace_start"() <{level = 10 : i32, message = "bqk,bkd->bqd"}> : () -> ()
    %cst_31 = arith.constant dense<0.000000e+00> : vector<1x8x16xf32>
    %64 = tpu.matmul %62, %63, %cst_31 {dimension_numbers = #tpu.dot_dimension_numbers<[2], [1], [1], [2], [0, 0, 0, 1, 1, 2], [0], [0]>} : vector<1x8x8xbf16>, vector<1x8x16xbf16>, vector<1x8x16xf32> -> vector<1x8x16xf32>
    "tpu.trace_stop"() : () -> ()
    %65 = vector.extract_strided_slice %28 {offsets = [0, 0, 16], sizes = [1, 8, 16], strides = [1, 1, 1]} : vector<1x8x32xbf16> to vector<1x8x16xbf16>
    %66 = vector.extract_strided_slice %30 {offsets = [0, 0, 16], sizes = [1, 8, 16], strides = [1, 1, 1]} : vector<1x8x32xbf16> to vector<1x8x16xbf16>
    "tpu.trace_start"() <{level = 10 : i32, message = "bqd,bkd->bqk"}> : () -> ()
    %cst_32 = arith.constant dense<0.000000e+00> : vector<1x8x8xf32>
    %67 = tpu.matmul %65, %66, %cst_32 {dimension_numbers = #tpu.dot_dimension_numbers<[2], [2], [1], [1], [0, 0, 0, 1, 1, 1], [0], [0]>} : vector<1x8x16xbf16>, vector<1x8x16xbf16>, vector<1x8x8xf32> -> vector<1x8x8xf32>
    %cst_33 = arith.constant 5.000000e-01 : f32
    "tpu.trace_stop"() : () -> ()
    %68 = vector.broadcast %cst_33 : f32 to vector<1x1x8xf32>
    %69 = arith.cmpf ogt, %42, %68 : vector<1x1x8xf32>
    %cst_34 = arith.constant -1.000000e+06 : f32
    %70 = vector.shape_cast %69 : vector<1x1x8xi1> to vector<1x1x8xi1>
    %71 = vector.broadcast %70 : vector<1x1x8xi1> to vector<1x8x8xi1>
    %72 = vector.broadcast %cst_34 : f32 to vector<1x8x8xf32>
    %73 = arith.select %71, %67, %72 : vector<1x8x8xi1>, vector<1x8x8xf32>
    %cst_35 = arith.constant dense<0xFF800000> : vector<1x8xf32>
    %74 = vector.multi_reduction <maximumf>, %73, %cst_35 [2] : vector<1x8x8xf32> to vector<1x8xf32>
    %75 = vector.shape_cast %74 : vector<1x8xf32> to vector<1x8x1xf32>
    %76 = vector.broadcast %75 : vector<1x8x1xf32> to vector<1x8x8xf32>
    %77 = arith.subf %73, %76 : vector<1x8x8xf32>
    %78 = math.exp %77 : vector<1x8x8xf32>
    %cst_36 = arith.constant dense<0.000000e+00> : vector<1x8xf32>
    %79 = vector.multi_reduction <add>, %78, %cst_36 [2] : vector<1x8x8xf32> to vector<1x8xf32>
    %80 = vector.shape_cast %79 : vector<1x8xf32> to vector<1x8x1xf32>
    %81 = tpu.reciprocal %80 {approx = true} : vector<1x8x1xf32> -> vector<1x8x1xf32>
    %82 = vector.broadcast %81 : vector<1x8x1xf32> to vector<1x8x8xf32>
    %83 = arith.mulf %78, %82 : vector<1x8x8xf32>
    %84 = arith.truncf %83 : vector<1x8x8xf32> to vector<1x8x8xbf16>
    %85 = vector.extract_strided_slice %32 {offsets = [0, 0, 16], sizes = [1, 8, 16], strides = [1, 1, 1]} : vector<1x8x32xbf16> to vector<1x8x16xbf16>
    "tpu.trace_start"() <{level = 10 : i32, message = "bqk,bkd->bqd"}> : () -> ()
    %cst_37 = arith.constant dense<0.000000e+00> : vector<1x8x16xf32>
    %86 = tpu.matmul %84, %85, %cst_37 {dimension_numbers = #tpu.dot_dimension_numbers<[2], [1], [1], [2], [0, 0, 0, 1, 1, 2], [0], [0]>} : vector<1x8x8xbf16>, vector<1x8x16xbf16>, vector<1x8x16xf32> -> vector<1x8x16xf32>
    "tpu.trace_stop"() : () -> ()
    %87 = tpu.concatenate %64, %86 in 2 : vector<1x8x16xf32>, vector<1x8x16xf32> -> vector<1x8x32xf32>
    %88 = vector.shape_cast %87 : vector<1x8x32xf32> to vector<8x32xf32>
    %89 = arith.truncf %88 : vector<8x32xf32> to vector<8x32xbf16>
    %c0_38 = arith.constant 0 : index
    %c0_39 = arith.constant 0 : index
    %c0_40 = arith.constant 0 : index
    %90 = vector.load %arg10[%c0_38, %c0_39, %c0_40] : memref<1x32x32xbf16, #tpu.memory_space<vmem>>, vector<1x32x32xbf16>
    %91 = vector.shape_cast %90 : vector<1x32x32xbf16> to vector<32x32xbf16>
    %cst_41 = arith.constant dense<0.000000e+00> : vector<8x32xf32>
    %92 = tpu.matmul %89, %91, %cst_41 {dimension_numbers = #tpu.dot_dimension_numbers<[1], [0], [0], [1], [0, 0, 1, 1], [], []>} : vector<8x32xbf16>, vector<32x32xbf16>, vector<8x32xf32> -> vector<8x32xf32>
    %c0_42 = arith.constant 0 : index
    %c0_43 = arith.constant 0 : index
    %c0_44 = arith.constant 0 : index
    %93 = vector.load %arg11[%c0_42, %c0_43, %c0_44] : memref<1x1x32xf32, #tpu.memory_space<vmem>>, vector<1x1x32xf32>
    %94 = vector.shape_cast %93 : vector<1x1x32xf32> to vector<1x32xf32>
    %95 = vector.broadcast %94 : vector<1x32xf32> to vector<8x32xf32>
    %96 = arith.addf %92, %95 : vector<8x32xf32>
    %97 = arith.addf %4, %96 : vector<8x32xf32>
    %c0_45 = arith.constant 0 : index
    %c0_46 = arith.constant 0 : index
    %c0_47 = arith.constant 0 : index
    %98 = vector.load %arg12[%c0_45, %c0_46, %c0_47] : memref<1x1x32xf32, #tpu.memory_space<vmem>>, vector<1x1x32xf32>
    %99 = vector.shape_cast %98 : vector<1x1x32xf32> to vector<1x32xf32>
    %c0_48 = arith.constant 0 : index
    %c0_49 = arith.constant 0 : index
    %c0_50 = arith.constant 0 : index
    %100 = vector.load %arg13[%c0_48, %c0_49, %c0_50] : memref<1x1x32xf32, #tpu.memory_space<vmem>>, vector<1x1x32xf32>
    %101 = vector.shape_cast %100 : vector<1x1x32xf32> to vector<1x32xf32>
    %cst_51 = arith.constant dense<0.000000e+00> : vector<8xf32>
    %102 = vector.multi_reduction <add>, %97, %cst_51 [1] : vector<8x32xf32> to vector<8xf32>
    %103 = vector.shape_cast %102 : vector<8xf32> to vector<8x1xf32>
    %cst_52 = arith.constant 3.200000e+01 : f32
    %104 = vector.broadcast %cst_52 : f32 to vector<8x1xf32>
    %105 = arith.divf %103, %104 : vector<8x1xf32>
    %106 = vector.broadcast %105 : vector<8x1xf32> to vector<8x32xf32>
    %107 = arith.subf %97, %106 : vector<8x32xf32>
    %108 = arith.mulf %107, %107 : vector<8x32xf32>
    %cst_53 = arith.constant dense<0.000000e+00> : vector<8xf32>
    %109 = vector.multi_reduction <add>, %108, %cst_53 [1] : vector<8x32xf32> to vector<8xf32>
    %110 = vector.shape_cast %109 : vector<8xf32> to vector<8x1xf32>
    %cst_54 = arith.constant 3.200000e+01 : f32
    %111 = vector.broadcast %cst_54 : f32 to vector<8x1xf32>
    %112 = arith.divf %110, %111 : vector<8x1xf32>
    %113 = vector.broadcast %105 : vector<8x1xf32> to vector<8x32xf32>
    %114 = arith.subf %97, %113 : vector<8x32xf32>
    %cst_55 = arith.constant 9.99999974E-6 : f32
    %115 = vector.broadcast %cst_55 : f32 to vector<8x1xf32>
    %116 = arith.addf %112, %115 : vector<8x1xf32>
    %117 = math.rsqrt %116 : vector<8x1xf32>
    %118 = vector.broadcast %117 : vector<8x1xf32> to vector<8x32xf32>
    %119 = arith.mulf %114, %118 : vector<8x32xf32>
    %120 = vector.broadcast %99 : vector<1x32xf32> to vector<8x32xf32>
    %121 = arith.mulf %119, %120 : vector<8x32xf32>
    %122 = vector.broadcast %101 : vector<1x32xf32> to vector<8x32xf32>
    %123 = arith.addf %121, %122 : vector<8x32xf32>
    %124 = arith.truncf %123 : vector<8x32xf32> to vector<8x32xbf16>
    %c0_56 = arith.constant 0 : index
    %c0_57 = arith.constant 0 : index
    %c0_58 = arith.constant 0 : index
    %125 = vector.load %arg14[%c0_56, %c0_57, %c0_58] : memref<1x32x64xbf16, #tpu.memory_space<vmem>>, vector<1x32x64xbf16>
    %126 = vector.shape_cast %125 : vector<1x32x64xbf16> to vector<32x64xbf16>
    %cst_59 = arith.constant dense<0.000000e+00> : vector<8x64xf32>
    %127 = tpu.matmul %124, %126, %cst_59 {dimension_numbers = #tpu.dot_dimension_numbers<[1], [0], [0], [1], [0, 0, 1, 1], [], []>} : vector<8x32xbf16>, vector<32x64xbf16>, vector<8x64xf32> -> vector<8x64xf32>
    %c0_60 = arith.constant 0 : index
    %c0_61 = arith.constant 0 : index
    %c0_62 = arith.constant 0 : index
    %128 = vector.load %arg15[%c0_60, %c0_61, %c0_62] : memref<1x1x64xf32, #tpu.memory_space<vmem>>, vector<1x1x64xf32>
    %129 = vector.shape_cast %128 : vector<1x1x64xf32> to vector<1x64xf32>
    %130 = vector.broadcast %129 : vector<1x64xf32> to vector<8x64xf32>
    %131 = arith.addf %127, %130 : vector<8x64xf32>
    %cst_63 = arith.constant 0.000000e+00 : f32
    %132 = vector.broadcast %cst_63 : f32 to vector<8x64xf32>
    %133 = arith.maximumf %131, %132 : vector<8x64xf32>
    %134 = arith.truncf %133 : vector<8x64xf32> to vector<8x64xbf16>
    %c0_64 = arith.constant 0 : index
    %c0_65 = arith.constant 0 : index
    %c0_66 = arith.constant 0 : index
    %135 = vector.load %arg16[%c0_64, %c0_65, %c0_66] : memref<1x64x32xbf16, #tpu.memory_space<vmem>>, vector<1x64x32xbf16>
    %136 = vector.shape_cast %135 : vector<1x64x32xbf16> to vector<64x32xbf16>
    %cst_67 = arith.constant dense<0.000000e+00> : vector<8x32xf32>
    %137 = tpu.matmul %134, %136, %cst_67 {dimension_numbers = #tpu.dot_dimension_numbers<[1], [0], [0], [1], [0, 0, 1, 1], [], []>} : vector<8x64xbf16>, vector<64x32xbf16>, vector<8x32xf32> -> vector<8x32xf32>
    %c0_68 = arith.constant 0 : index
    %c0_69 = arith.constant 0 : index
    %c0_70 = arith.constant 0 : index
    %138 = vector.load %arg17[%c0_68, %c0_69, %c0_70] : memref<1x1x32xf32, #tpu.memory_space<vmem>>, vector<1x1x32xf32>
    %139 = vector.shape_cast %138 : vector<1x1x32xf32> to vector<1x32xf32>
    %140 = vector.broadcast %139 : vector<1x32xf32> to vector<8x32xf32>
    %141 = arith.addf %137, %140 : vector<8x32xf32>
    %142 = arith.addf %123, %141 : vector<8x32xf32>
    %c0_71 = arith.constant 0 : index
    %c0_72 = arith.constant 0 : index
    %c0_73 = arith.constant 0 : index
    %143 = vector.load %arg18[%c0_71, %c0_72, %c0_73] : memref<1x1x32xf32, #tpu.memory_space<vmem>>, vector<1x1x32xf32>
    %144 = vector.shape_cast %143 : vector<1x1x32xf32> to vector<1x32xf32>
    %c0_74 = arith.constant 0 : index
    %c0_75 = arith.constant 0 : index
    %c0_76 = arith.constant 0 : index
    %145 = vector.load %arg19[%c0_74, %c0_75, %c0_76] : memref<1x1x32xf32, #tpu.memory_space<vmem>>, vector<1x1x32xf32>
    %146 = vector.shape_cast %145 : vector<1x1x32xf32> to vector<1x32xf32>
    %cst_77 = arith.constant dense<0.000000e+00> : vector<8xf32>
    %147 = vector.multi_reduction <add>, %142, %cst_77 [1] : vector<8x32xf32> to vector<8xf32>
    %148 = vector.shape_cast %147 : vector<8xf32> to vector<8x1xf32>
    %cst_78 = arith.constant 3.200000e+01 : f32
    %149 = vector.broadcast %cst_78 : f32 to vector<8x1xf32>
    %150 = arith.divf %148, %149 : vector<8x1xf32>
    %151 = vector.broadcast %150 : vector<8x1xf32> to vector<8x32xf32>
    %152 = arith.subf %142, %151 : vector<8x32xf32>
    %153 = arith.mulf %152, %152 : vector<8x32xf32>
    %cst_79 = arith.constant dense<0.000000e+00> : vector<8xf32>
    %154 = vector.multi_reduction <add>, %153, %cst_79 [1] : vector<8x32xf32> to vector<8xf32>
    %155 = vector.shape_cast %154 : vector<8xf32> to vector<8x1xf32>
    %cst_80 = arith.constant 3.200000e+01 : f32
    %156 = vector.broadcast %cst_80 : f32 to vector<8x1xf32>
    %157 = arith.divf %155, %156 : vector<8x1xf32>
    %158 = vector.broadcast %150 : vector<8x1xf32> to vector<8x32xf32>
    %159 = arith.subf %142, %158 : vector<8x32xf32>
    %cst_81 = arith.constant 9.99999974E-6 : f32
    %160 = vector.broadcast %cst_81 : f32 to vector<8x1xf32>
    %161 = arith.addf %157, %160 : vector<8x1xf32>
    %162 = math.rsqrt %161 : vector<8x1xf32>
    %163 = vector.broadcast %162 : vector<8x1xf32> to vector<8x32xf32>
    %164 = arith.mulf %159, %163 : vector<8x32xf32>
    %165 = vector.broadcast %144 : vector<1x32xf32> to vector<8x32xf32>
    %166 = arith.mulf %164, %165 : vector<8x32xf32>
    %167 = vector.broadcast %146 : vector<1x32xf32> to vector<8x32xf32>
    %168 = arith.addf %166, %167 : vector<8x32xf32>
    %169 = vector.shape_cast %168 : vector<8x32xf32> to vector<1x8x32xf32>
    %c0_82 = arith.constant 0 : index
    %c0_83 = arith.constant 0 : index
    %c0_84 = arith.constant 0 : index
    %170 = vector.load %arg21[%c0_82, %c0_83, %c0_84] : memref<1x8x32xf32, #tpu.memory_space<vmem>>, vector<1x8x32xf32>
    tpu.vector_store %arg21[%c0_82, %c0_83, %c0_84], %169 {strides = array<i32>} : memref<1x8x32xf32, #tpu.memory_space<vmem>>, vector<1x8x32xf32>,
    %c1_i32_85 = arith.constant 1 : i32
    %171 = arith.cmpi eq, %arg1, %c1_i32_85 : i32
    %172 = arith.extui %171 : i1 to i32
    %c0_i32_86 = arith.constant 0 : i32
    %173 = arith.cmpi ne, %172, %c0_i32_86 : i32
    scf.if %173 {
      %c0_87 = arith.constant 0 : index
      %c0_88 = arith.constant 0 : index
      %c0_89 = arith.constant 0 : index
      %174 = vector.load %arg20[%c0_87, %c0_88, %c0_89] : memref<1x8x32xf32, #tpu.memory_space<vmem>>, vector<1x8x32xf32>
      tpu.vector_store %arg20[%c0_87, %c0_88, %c0_89], %169 {strides = array<i32>} : memref<1x8x32xf32, #tpu.memory_space<vmem>>, vector<1x8x32xf32>,
    } else {
    }
    return
  }
  func.func @transform_0(%arg0: i32, %arg1: i32, %arg2: memref<2xi32, #tpu.memory_space<smem>>) -> (i32, i32, i32) {
    %c0_i32 = arith.constant 0 : i32
    %c0_i32_0 = arith.constant 0 : i32
    %c0_i32_1 = arith.constant 0 : i32
    return %arg0, %c0_i32, %c0_i32_0 : i32, i32, i32
  }
  func.func @transform_1(%arg0: i32, %arg1: i32, %arg2: memref<2xi32, #tpu.memory_space<smem>>) -> (i32, i32, i32) {
    %c0_i32 = arith.constant 0 : i32
    %c0_i32_0 = arith.constant 0 : i32
    %c0_i32_1 = arith.constant 0 : i32
    return %arg1, %c0_i32, %c0_i32_0 : i32, i32, i32
  }
  func.func @transform_2(%arg0: i32, %arg1: i32, %arg2: memref<2xi32, #tpu.memory_space<smem>>) -> (i32, i32, i32) {
    %c0_i32 = arith.constant 0 : i32
    %c0_i32_0 = arith.constant 0 : i32
    %c0_i32_1 = arith.constant 0 : i32
    return %arg1, %c0_i32, %c0_i32_0 : i32, i32, i32
  }
  func.func @transform_3(%arg0: i32, %arg1: i32, %arg2: memref<2xi32, #tpu.memory_space<smem>>) -> (i32, i32, i32) {
    %c0_i32 = arith.constant 0 : i32
    %c0_i32_0 = arith.constant 0 : i32
    %c0_i32_1 = arith.constant 0 : i32
    return %arg1, %c0_i32, %c0_i32_0 : i32, i32, i32
  }
  func.func @transform_4(%arg0: i32, %arg1: i32, %arg2: memref<2xi32, #tpu.memory_space<smem>>) -> (i32, i32, i32) {
    %c0_i32 = arith.constant 0 : i32
    %c0_i32_0 = arith.constant 0 : i32
    %c0_i32_1 = arith.constant 0 : i32
    return %arg1, %c0_i32, %c0_i32_0 : i32, i32, i32
  }
  func.func @transform_5(%arg0: i32, %arg1: i32, %arg2: memref<2xi32, #tpu.memory_space<smem>>) -> (i32, i32, i32) {
    %c0_i32 = arith.constant 0 : i32
    %c0_i32_0 = arith.constant 0 : i32
    %c0_i32_1 = arith.constant 0 : i32
    return %arg1, %c0_i32, %c0_i32_0 : i32, i32, i32
  }
  func.func @transform_6(%arg0: i32, %arg1: i32, %arg2: memref<2xi32, #tpu.memory_space<smem>>) -> (i32, i32, i32) {
    %c0_i32 = arith.constant 0 : i32
    %c0_i32_0 = arith.constant 0 : i32
    %c0_i32_1 = arith.constant 0 : i32
    return %arg1, %c0_i32, %c0_i32_0 : i32, i32, i32
  }
  func.func @transform_7(%arg0: i32, %arg1: i32, %arg2: memref<2xi32, #tpu.memory_space<smem>>) -> (i32, i32, i32) {
    %c0_i32 = arith.constant 0 : i32
    %c0_i32_0 = arith.constant 0 : i32
    %c0_i32_1 = arith.constant 0 : i32
    return %arg1, %c0_i32, %c0_i32_0 : i32, i32, i32
  }
  func.func @transform_8(%arg0: i32, %arg1: i32, %arg2: memref<2xi32, #tpu.memory_space<smem>>) -> (i32, i32, i32) {
    %c0_i32 = arith.constant 0 : i32
    %c0_i32_0 = arith.constant 0 : i32
    %c0_i32_1 = arith.constant 0 : i32
    return %arg1, %c0_i32, %c0_i32_0 : i32, i32, i32
  }
  func.func @transform_9(%arg0: i32, %arg1: i32, %arg2: memref<2xi32, #tpu.memory_space<smem>>) -> (i32, i32, i32) {
    %c0_i32 = arith.constant 0 : i32
    %c0_i32_0 = arith.constant 0 : i32
    %c0_i32_1 = arith.constant 0 : i32
    return %arg1, %c0_i32, %c0_i32_0 : i32, i32, i32
  }
  func.func @transform_10(%arg0: i32, %arg1: i32, %arg2: memref<2xi32, #tpu.memory_space<smem>>) -> (i32, i32, i32) {
    %c0_i32 = arith.constant 0 : i32
    %c0_i32_0 = arith.constant 0 : i32
    %c0_i32_1 = arith.constant 0 : i32
    return %arg1, %c0_i32, %c0_i32_0 : i32, i32, i32
  }
  func.func @transform_11(%arg0: i32, %arg1: i32, %arg2: memref<2xi32, #tpu.memory_space<smem>>) -> (i32, i32, i32) {
    %c0_i32 = arith.constant 0 : i32
    %c0_i32_0 = arith.constant 0 : i32
    %c0_i32_1 = arith.constant 0 : i32
    return %arg1, %c0_i32, %c0_i32_0 : i32, i32, i32
  }
  func.func @transform_12(%arg0: i32, %arg1: i32, %arg2: memref<2xi32, #tpu.memory_space<smem>>) -> (i32, i32, i32) {
    %c0_i32 = arith.constant 0 : i32
    %c0_i32_0 = arith.constant 0 : i32
    %c0_i32_1 = arith.constant 0 : i32
    return %arg1, %c0_i32, %c0_i32_0 : i32, i32, i32
  }
  func.func @transform_13(%arg0: i32, %arg1: i32, %arg2: memref<2xi32, #tpu.memory_space<smem>>) -> (i32, i32, i32) {
    %c0_i32 = arith.constant 0 : i32
    %c0_i32_0 = arith.constant 0 : i32
    %c0_i32_1 = arith.constant 0 : i32
    return %arg1, %c0_i32, %c0_i32_0 : i32, i32, i32
  }
  func.func @transform_14(%arg0: i32, %arg1: i32, %arg2: memref<2xi32, #tpu.memory_space<smem>>) -> (i32, i32, i32) {
    %c0_i32 = arith.constant 0 : i32
    %c0_i32_0 = arith.constant 0 : i32
    %c0_i32_1 = arith.constant 0 : i32
    return %arg1, %c0_i32, %c0_i32_0 : i32, i32, i32
  }
  func.func @transform_15(%arg0: i32, %arg1: i32, %arg2: memref<2xi32, #tpu.memory_space<smem>>) -> (i32, i32, i32) {
    %c0_i32 = arith.constant 0 : i32
    %c0_i32_0 = arith.constant 0 : i32
    %c0_i32_1 = arith.constant 0 : i32
    return %arg1, %c0_i32, %c0_i32_0 : i32, i32, i32
  }
  func.func @transform_16(%arg0: i32, %arg1: i32, %arg2: memref<2xi32, #tpu.memory_space<smem>>) -> (i32, i32, i32) {
    %c0_i32 = arith.constant 0 : i32
    %c0_i32_0 = arith.constant 0 : i32
    %c0_i32_1 = arith.constant 0 : i32
    return %arg1, %c0_i32, %c0_i32_0 : i32, i32, i32
  }
  func.func @transform_17(%arg0: i32, %arg1: i32, %arg2: memref<2xi32, #tpu.memory_space<smem>>) -> (i32, i32, i32) {
    %c0_i32 = arith.constant 0 : i32
    %c0_i32_0 = arith.constant 0 : i32
    %c0_i32_1 = arith.constant 0 : i32
    return %arg0, %c0_i32, %c0_i32_0 : i32, i32, i32
  }
}

</mosaic_0001>

<llo_original>
// kernel: tpu_custom_call.1
$region0: #{tpu_custom_call.1}
  #allocation0 [shape = 'u32[]', space=smem, size = 0x4, offset = 0x4, fixed_abs, tag = 'smem constant byte address 0x4 - core index']
  #allocation1 [shape = 'u32[144,128]{1,0:T(1,128)}', space=vmem, size = 0x12000, scoped, tag = 'internal scratch']
  #allocation2 [shape = 'f32[1,8,32]{2,1,0:T(8,128)}', space=vmem, size = 0x1000, scoped, tag = 'scratch operand']
  #allocation3 [shape = 's32[1]{0}', space=sflag, size = 0x4, scoped, tag = 'scoped memory for tpu_custom_call.1']
  #allocation4 [shape = 'u8[512]{0}', space=smem, size = 0x200, scoped, tag = 'prefetched SMEM operand 0']
  %s0 = inlined_call_operand.hbm [shape: s32[2], index: 0, kind: input, shape index: {}]
  %s1 = inlined_call_operand.hbm [shape: f32[2,8,32], index: 1, kind: input, shape index: {}]
  %s2 = inlined_call_operand.vmem [shape: bf16[2,32,32], index: 2, kind: input, shape index: {}]
  %s3 = inlined_call_operand.vmem [shape: f32[2,1,32], index: 3, kind: input, shape index: {}]
  %s4 = inlined_call_operand.vmem [shape: bf16[2,32,32], index: 4, kind: input, shape index: {}]
  %s5 = inlined_call_operand.vmem [shape: f32[2,1,32], index: 5, kind: input, shape index: {}]
  %s6 = inlined_call_operand.vmem [shape: bf16[2,32,32], index: 6, kind: input, shape index: {}]
  %s7 = inlined_call_operand.vmem [shape: f32[2,1,32], index: 7, kind: input, shape index: {}]
  %s8 = inlined_call_operand.hbm [shape: bf16[2,32,32], index: 8, kind: input, shape index: {}]
  %s9 = inlined_call_operand.vmem [shape: f32[2,1,32], index: 9, kind: input, shape index: {}]
  %s10 = inlined_call_operand.vmem [shape: f32[2,1,32], index: 10, kind: input, shape index: {}]
  %s11 = inlined_call_operand.vmem [shape: f32[2,1,32], index: 11, kind: input, shape index: {}]
  %s12 = inlined_call_operand.hbm [shape: bf16[2,32,64], index: 12, kind: input, shape index: {}]
  %s13 = inlined_call_operand.vmem [shape: f32[2,1,64], index: 13, kind: input, shape index: {}]
  %s14 = inlined_call_operand.vmem [shape: bf16[2,64,32], index: 14, kind: input, shape index: {}]
  %s15 = inlined_call_operand.vmem [shape: f32[2,1,32], index: 15, kind: input, shape index: {}]
  %s16 = inlined_call_operand.vmem [shape: f32[2,1,32], index: 16, kind: input, shape index: {}]
  %s17 = inlined_call_operand.vmem [shape: f32[2,1,32], index: 17, kind: input, shape index: {}]
  %s18 = inlined_call_operand.hbm [shape: f32[2,8,32], index: 18, kind: output, shape index: {}]
  %s19 = sld [smem:[#allocation0]]
  $region121: #{tpu_custom_call.1} parent=0
    _
  %s21 = ssub.s32 1, %s19
  %s22 = scalar_select 0, %s21, %s19
  %24 = dma.hbm_to_smem %s0, 16, [#allocation4], [#allocation3]
  %25 = dma.done [#allocation3], 16
  %26 = sfence
  $region1: #{tpu_custom_call.1} parent=0
    #allocation5 [shape = 'u8[8192]{0}', space=vmem, size = 0x2000, scoped, tag = 'input window, operand 1']
    #allocation6 [shape = 's32[2]{0}', space=sflag, size = 0x8, scoped, tag = 'scoped memory for tpu_custom_call.1']
    #allocation7 [shape = 's32[2]{0}', space=sflag, size = 0x8, scoped, tag = 'scoped memory for tpu_custom_call.1']
    #allocation8 [shape = 'u8[16384]{0}', space=vmem, size = 0x4000, scoped, tag = 'input window, operand 8']
    #allocation9 [shape = 's32[2]{0}', space=sflag, size = 0x8, scoped, tag = 'scoped memory for tpu_custom_call.1']
    #allocation10 [shape = 'u8[16384]{0}', space=vmem, size = 0x4000, scoped, tag = 'input window, operand 12']
    #allocation11 [shape = 'u8[8192]{0}', space=vmem, size = 0x2000, scoped, tag = 'output window, operand 0']
    %27 = vsyncpa [#allocation6], 0
    %s28 = scalar_lea.sflag [#allocation6], 1
    %29 = vsyncpa %s28, 0
    %30 = vsyncpa [#allocation9], 0
    %s31 = scalar_lea.sflag [#allocation9], 1
    %32 = vsyncpa %s31, 0
    %33 = vsyncpa [#allocation7], 0
    %s34 = scalar_lea.sflag [#allocation7], 1
    %35 = vsyncpa %s34, 0
    loop: start=0, step=1, limit=6
    $region2: #{tpu_custom_call.1} parent=1 // loop_pre_header
      _
    $region3: #{tpu_custom_call.1} parent=1 // loop_header
      %s37 = sphi 0, %s41
      %p38 = scmp.ge.s32.totalorder %s37, 6
      %s44 = sphi 0, %s56
      %s45 = sphi 0, %s52
      %s46 = sphi 0, %s44
      %s47 = sphi 0, %s45
      %s48 = sphi 0, %s46
      %s49 = sphi 0, %s47
      %s59 = sphi 0, %s61
      %s62 = sphi 0, %s59
      %s63 = sphi 0, %s62
      %s79 = sphi 0, %s63
      %s85 = sphi 0, %s87
      %s88 = sphi 0, %s85
      %s89 = sphi 0, %s88
      %s105 = sphi 0, %s89
      %s111 = sphi 0, %s113
      %s114 = sphi 0, %s111
      %s115 = sphi 0, %s114
      %s131 = sphi 0, %s115
      %s137 = sphi 0, %s139
      %s140 = sphi 0, %s137
      %s141 = sphi 0, %s140
      %s157 = sphi 0, %s141
      %s163 = sphi 0, %s165
      %s166 = sphi 0, %s163
      %s167 = sphi 0, %s166
      %s183 = sphi 0, %s167
      %s189 = sphi 0, %s191
      %s192 = sphi 0, %s189
      %s193 = sphi 0, %s192
      %s209 = sphi 0, %s193
      %s215 = sphi 0, %s217
      %s218 = sphi 0, %s215
      %s219 = sphi 0, %s218
      %s235 = sphi 0, %s219
      %s241 = sphi 0, %s243
      %s244 = sphi 0, %s241
      %s245 = sphi 0, %s244
      %s261 = sphi 0, %s245
      %s267 = sphi 0, %s269
      %s270 = sphi 0, %s267
      %s271 = sphi 0, %s270
      %s287 = sphi 0, %s271
      %s293 = sphi 0, %s295
      %s296 = sphi 0, %s293
      %s297 = sphi 0, %s296
      %s313 = sphi 0, %s297
      %s319 = sphi 0, %s321
      %s322 = sphi 0, %s319
      %s323 = sphi 0, %s322
      %s339 = sphi 0, %s323
      %s345 = sphi 0, %s347
      %s348 = sphi 0, %s345
      %s349 = sphi 0, %s348
      %s365 = sphi 0, %s349
      %s371 = sphi 0, %s373
      %s374 = sphi 0, %s371
      %s375 = sphi 0, %s374
      %s391 = sphi 0, %s375
      %s397 = sphi 0, %s399
      %s400 = sphi 0, %s397
      %s401 = sphi 0, %s400
      %s417 = sphi 0, %s401
      %s423 = sphi 0, %s425
      %s426 = sphi 0, %s423
      %s427 = sphi 0, %s426
      %s443 = sphi 0, %s427
      %s449 = sphi 0, %s451
      %s452 = sphi 0, %s449
      %s453 = sphi 0, %s452
      %s469 = sphi 0, %s453
      %s475 = sphi 0, %s477
      %s478 = sphi 0, %s475
      %s479 = sphi 0, %s478
      %s495 = sphi 0, %s479
      %s501 = sphi 0, %s503
      %s504 = sphi 0, %s501
      %s505 = sphi 0, %s504
      %s521 = sphi 0, %s505
    $region4: #{tpu_custom_call.1} parent=1 // loop_header_branch
      %40 = sbr.rel (%p38) target = $region8
    $region5: #{tpu_custom_call.1} parent=1 // loop_body
      %s42 = ssub.s32 %s37, 1
      %s43 = ssub.s32 %s37, 2
      %s50 = sadd.s32 1, %s45
      %p51 = scmp.ge.s32.totalorder %s50, 2
      %s52 = scalar_select %p51, 0, %s50
      %s53 = sadd.s32 1, %s44
      %s54 = scalar_select %p51, %s53, %s44
      %p55 = scmp.ge.s32.totalorder %s54, 2
      %s56 = scalar_select %p55, 0, %s54
      %s57 = ssub.s32 %s44, %s56
      %p58 = scmp.eq.s32.totalorder %s57, 0
      %s60 = sadd.s32 %s59, 1
      %s61 = scalar_select %p58, %s59, %s60
      %p64 = pneg %p58
      %p65 = scmp.eq.s32.totalorder %s37, 3
      %p66 = por %p64, %p65
      %p67 = scmp.ne.s32.totalorder %s59, %s62
      %p68 = scmp.eq.s32.totalorder %s37, 0
      %p69 = por %p67, %p68
      %p70 = scmp.ne.s32.totalorder %s59, %s62
      %p71 = scmp.eq.s32.totalorder %s42, 3
      %p72 = por %p70, %p71
      %p73 = scmp.ne.s32.totalorder %s62, %s63
      %p74 = scmp.eq.s32.totalorder %s42, 0
      %p75 = por %p73, %p74
      %p76 = scmp.ne.s32.totalorder %s62, %s63
      %p77 = scmp.eq.s32.totalorder %s43, 3
      %p78 = por %p76, %p77
      %p80 = scmp.ne.s32.totalorder %s63, %s79
      %p81 = scmp.eq.s32.totalorder %s43, 0
      %p82 = por %p80, %p81
      %s83 = ssub.s32 %s45, %s52
      %p84 = scmp.eq.s32.totalorder %s83, 0
      %s86 = sadd.s32 %s85, 1
      %s87 = scalar_select %p84, %s85, %s86
      %p90 = pneg %p84
      %p91 = scmp.eq.s32.totalorder %s37, 3
      %p92 = por %p90, %p91
      %p93 = scmp.ne.s32.totalorder %s85, %s88
      %p94 = scmp.eq.s32.totalorder %s37, 0
      %p95 = por %p93, %p94
      %p96 = scmp.ne.s32.totalorder %s85, %s88
      %p97 = scmp.eq.s32.totalorder %s42, 3
      %p98 = por %p96, %p97
      %p99 = scmp.ne.s32.totalorder %s88, %s89
      %p100 = scmp.eq.s32.totalorder %s42, 0
      %p101 = por %p99, %p100
      %p102 = scmp.ne.s32.totalorder %s88, %s89
      %p103 = scmp.eq.s32.totalorder %s43, 3
      %p104 = por %p102, %p103
      %p106 = scmp.ne.s32.totalorder %s89, %s105
      %p107 = scmp.eq.s32.totalorder %s43, 0
      %p108 = por %p106, %p107
      %s109 = ssub.s32 %s45, %s52
      %p110 = scmp.eq.s32.totalorder %s109, 0
      %s112 = sadd.s32 %s111, 1
      %s113 = scalar_select %p110, %s111, %s112
      %p116 = pneg %p110
      %p117 = scmp.eq.s32.totalorder %s37, 3
      %p118 = por %p116, %p117
      %p119 = scmp.ne.s32.totalorder %s111, %s114
      %p120 = scmp.eq.s32.totalorder %s37, 0
      %p121 = por %p119, %p120
      %p122 = scmp.ne.s32.totalorder %s111, %s114
      %p123 = scmp.eq.s32.totalorder %s42, 3
      %p124 = por %p122, %p123
      %p125 = scmp.ne.s32.totalorder %s114, %s115
      %p126 = scmp.eq.s32.totalorder %s42, 0
      %p127 = por %p125, %p126
      %p128 = scmp.ne.s32.totalorder %s114, %s115
      %p129 = scmp.eq.s32.totalorder %s43, 3
      %p130 = por %p128, %p129
      %p132 = scmp.ne.s32.totalorder %s115, %s131
      %p133 = scmp.eq.s32.totalorder %s43, 0
      %p134 = por %p132, %p133
      %s135 = ssub.s32 %s45, %s52
      %p136 = scmp.eq.s32.totalorder %s135, 0
      %s138 = sadd.s32 %s137, 1
      %s139 = scalar_select %p136, %s137, %s138
      %p142 = pneg %p136
      %p143 = scmp.eq.s32.totalorder %s37, 3
      %p144 = por %p142, %p143
      %p145 = scmp.ne.s32.totalorder %s137, %s140
      %p146 = scmp.eq.s32.totalorder %s37, 0
      %p147 = por %p145, %p146
      %p148 = scmp.ne.s32.totalorder %s137, %s140
      %p149 = scmp.eq.s32.totalorder %s42, 3
      %p150 = por %p148, %p149
      %p151 = scmp.ne.s32.totalorder %s140, %s141
      %p152 = scmp.eq.s32.totalorder %s42, 0
      %p153 = por %p151, %p152
      %p154 = scmp.ne.s32.totalorder %s140, %s141
      %p155 = scmp.eq.s32.totalorder %s43, 3
      %p156 = por %p154, %p155
      %p158 = scmp.ne.s32.totalorder %s141, %s157
      %p159 = scmp.eq.s32.totalorder %s43, 0
      %p160 = por %p158, %p159
      %s161 = ssub.s32 %s45, %s52
      %p162 = scmp.eq.s32.totalorder %s161, 0
      %s164 = sadd.s32 %s163, 1
      %s165 = scalar_select %p162, %s163, %s164
      %p168 = pneg %p162
      %p169 = scmp.eq.s32.totalorder %s37, 3
      %p170 = por %p168, %p169
      %p171 = scmp.ne.s32.totalorder %s163, %s166
      %p172 = scmp.eq.s32.totalorder %s37, 0
      %p173 = por %p171, %p172
      %p174 = scmp.ne.s32.totalorder %s163, %s166
      %p175 = scmp.eq.s32.totalorder %s42, 3
      %p176 = por %p174, %p175
      %p177 = scmp.ne.s32.totalorder %s166, %s167
      %p178 = scmp.eq.s32.totalorder %s42, 0
      %p179 = por %p177, %p178
      %p180 = scmp.ne.s32.totalorder %s166, %s167
      %p181 = scmp.eq.s32.totalorder %s43, 3
      %p182 = por %p180, %p181
      %p184 = scmp.ne.s32.totalorder %s167, %s183
      %p185 = scmp.eq.s32.totalorder %s43, 0
      %p186 = por %p184, %p185
      %s187 = ssub.s32 %s45, %s52
      %p188 = scmp.eq.s32.totalorder %s187, 0
      %s190 = sadd.s32 %s189, 1
      %s191 = scalar_select %p188, %s189, %s190
      %p194 = pneg %p188
      %p195 = scmp.eq.s32.totalorder %s37, 3
      %p196 = por %p194, %p195
      %p197 = scmp.ne.s32.totalorder %s189, %s192
      %p198 = scmp.eq.s32.totalorder %s37, 0
      %p199 = por %p197, %p198
      %p200 = scmp.ne.s32.totalorder %s189, %s192
      %p201 = scmp.eq.s32.totalorder %s42, 3
      %p202 = por %p200, %p201
      %p203 = scmp.ne.s32.totalorder %s192, %s193
      %p204 = scmp.eq.s32.totalorder %s42, 0
      %p205 = por %p203, %p204
      %p206 = scmp.ne.s32.totalorder %s192, %s193
      %p207 = scmp.eq.s32.totalorder %s43, 3
      %p208 = por %p206, %p207
      %p210 = scmp.ne.s32.totalorder %s193, %s209
      %p211 = scmp.eq.s32.totalorder %s43, 0
      %p212 = por %p210, %p211
      %s213 = ssub.s32 %s45, %s52
      %p214 = scmp.eq.s32.totalorder %s213, 0
      %s216 = sadd.s32 %s215, 1
      %s217 = scalar_select %p214, %s215, %s216
      %p220 = pneg %p214
      %p221 = scmp.eq.s32.totalorder %s37, 3
      %p222 = por %p220, %p221
      %p223 = scmp.ne.s32.totalorder %s215, %s218
      %p224 = scmp.eq.s32.totalorder %s37, 0
      %p225 = por %p223, %p224
      %p226 = scmp.ne.s32.totalorder %s215, %s218
      %p227 = scmp.eq.s32.totalorder %s42, 3
      %p228 = por %p226, %p227
      %p229 = scmp.ne.s32.totalorder %s218, %s219
      %p230 = scmp.eq.s32.totalorder %s42, 0
      %p231 = por %p229, %p230
      %p232 = scmp.ne.s32.totalorder %s218, %s219
      %p233 = scmp.eq.s32.totalorder %s43, 3
      %p234 = por %p232, %p233
      %p236 = scmp.ne.s32.totalorder %s219, %s235
      %p237 = scmp.eq.s32.totalorder %s43, 0
      %p238 = por %p236, %p237
      %s239 = ssub.s32 %s45, %s52
      %p240 = scmp.eq.s32.totalorder %s239, 0
      %s242 = sadd.s32 %s241, 1
      %s243 = scalar_select %p240, %s241, %s242
      %p246 = pneg %p240
      %p247 = scmp.eq.s32.totalorder %s37, 3
      %p248 = por %p246, %p247
      %p249 = scmp.ne.s32.totalorder %s241, %s244
      %p250 = scmp.eq.s32.totalorder %s37, 0
      %p251 = por %p249, %p250
      %p252 = scmp.ne.s32.totalorder %s241, %s244
      %p253 = scmp.eq.s32.totalorder %s42, 3
      %p254 = por %p252, %p253
      %p255 = scmp.ne.s32.totalorder %s244, %s245
      %p256 = scmp.eq.s32.totalorder %s42, 0
      %p257 = por %p255, %p256
      %p258 = scmp.ne.s32.totalorder %s244, %s245
      %p259 = scmp.eq.s32.totalorder %s43, 3
      %p260 = por %p258, %p259
      %p262 = scmp.ne.s32.totalorder %s245, %s261
      %p263 = scmp.eq.s32.totalorder %s43, 0
      %p264 = por %p262, %p263
      %s265 = ssub.s32 %s45, %s52
      %p266 = scmp.eq.s32.totalorder %s265, 0
      %s268 = sadd.s32 %s267, 1
      %s269 = scalar_select %p266, %s267, %s268
      %p272 = pneg %p266
      %p273 = scmp.eq.s32.totalorder %s37, 3
      %p274 = por %p272, %p273
      %p275 = scmp.ne.s32.totalorder %s267, %s270
      %p276 = scmp.eq.s32.totalorder %s37, 0
      %p277 = por %p275, %p276
      %p278 = scmp.ne.s32.totalorder %s267, %s270
      %p279 = scmp.eq.s32.totalorder %s42, 3
      %p280 = por %p278, %p279
      %p281 = scmp.ne.s32.totalorder %s270, %s271
      %p282 = scmp.eq.s32.totalorder %s42, 0
      %p283 = por %p281, %p282
      %p284 = scmp.ne.s32.totalorder %s270, %s271
      %p285 = scmp.eq.s32.totalorder %s43, 3
      %p286 = por %p284, %p285
      %p288 = scmp.ne.s32.totalorder %s271, %s287
      %p289 = scmp.eq.s32.totalorder %s43, 0
      %p290 = por %p288, %p289
      %s291 = ssub.s32 %s45, %s52
      %p292 = scmp.eq.s32.totalorder %s291, 0
      %s294 = sadd.s32 %s293, 1
      %s295 = scalar_select %p292, %s293, %s294
      %p298 = pneg %p292
      %p299 = scmp.eq.s32.totalorder %s37, 3
      %p300 = por %p298, %p299
      %p301 = scmp.ne.s32.totalorder %s293, %s296
      %p302 = scmp.eq.s32.totalorder %s37, 0
      %p303 = por %p301, %p302
      %p304 = scmp.ne.s32.totalorder %s293, %s296
      %p305 = scmp.eq.s32.totalorder %s42, 3
      %p306 = por %p304, %p305
      %p307 = scmp.ne.s32.totalorder %s296, %s297
      %p308 = scmp.eq.s32.totalorder %s42, 0
      %p309 = por %p307, %p308
      %p310 = scmp.ne.s32.totalorder %s296, %s297
      %p311 = scmp.eq.s32.totalorder %s43, 3
      %p312 = por %p310, %p311
      %p314 = scmp.ne.s32.totalorder %s297, %s313
      %p315 = scmp.eq.s32.totalorder %s43, 0
      %p316 = por %p314, %p315
      %s317 = ssub.s32 %s45, %s52
      %p318 = scmp.eq.s32.totalorder %s317, 0
      %s320 = sadd.s32 %s319, 1
      %s321 = scalar_select %p318, %s319, %s320
      %p324 = pneg %p318
      %p325 = scmp.eq.s32.totalorder %s37, 3
      %p326 = por %p324, %p325
      %p327 = scmp.ne.s32.totalorder %s319, %s322
      %p328 = scmp.eq.s32.totalorder %s37, 0
      %p329 = por %p327, %p328
      %p330 = scmp.ne.s32.totalorder %s319, %s322
      %p331 = scmp.eq.s32.totalorder %s42, 3
      %p332 = por %p330, %p331
      %p333 = scmp.ne.s32.totalorder %s322, %s323
      %p334 = scmp.eq.s32.totalorder %s42, 0
      %p335 = por %p333, %p334
      %p336 = scmp.ne.s32.totalorder %s322, %s323
      %p337 = scmp.eq.s32.totalorder %s43, 3
      %p338 = por %p336, %p337
      %p340 = scmp.ne.s32.totalorder %s323, %s339
      %p341 = scmp.eq.s32.totalorder %s43, 0
      %p342 = por %p340, %p341
      %s343 = ssub.s32 %s45, %s52
      %p344 = scmp.eq.s32.totalorder %s343, 0
      %s346 = sadd.s32 %s345, 1
      %s347 = scalar_select %p344, %s345, %s346
      %p350 = pneg %p344
      %p351 = scmp.eq.s32.totalorder %s37, 3
      %p352 = por %p350, %p351
      %p353 = scmp.ne.s32.totalorder %s345, %s348
      %p354 = scmp.eq.s32.totalorder %s37, 0
      %p355 = por %p353, %p354
      %p356 = scmp.ne.s32.totalorder %s345, %s348
      %p357 = scmp.eq.s32.totalorder %s42, 3
      %p358 = por %p356, %p357
      %p359 = scmp.ne.s32.totalorder %s348, %s349
      %p360 = scmp.eq.s32.totalorder %s42, 0
      %p361 = por %p359, %p360
      %p362 = scmp.ne.s32.totalorder %s348, %s349
      %p363 = scmp.eq.s32.totalorder %s43, 3
      %p364 = por %p362, %p363
      %p366 = scmp.ne.s32.totalorder %s349, %s365
      %p367 = scmp.eq.s32.totalorder %s43, 0
      %p368 = por %p366, %p367
      %s369 = ssub.s32 %s45, %s52
      %p370 = scmp.eq.s32.totalorder %s369, 0
      %s372 = sadd.s32 %s371, 1
      %s373 = scalar_select %p370, %s371, %s372
      %p376 = pneg %p370
      %p377 = scmp.eq.s32.totalorder %s37, 3
      %p378 = por %p376, %p377
      %p379 = scmp.ne.s32.totalorder %s371, %s374
      %p380 = scmp.eq.s32.totalorder %s37, 0
      %p381 = por %p379, %p380
      %p382 = scmp.ne.s32.totalorder %s371, %s374
      %p383 = scmp.eq.s32.totalorder %s42, 3
      %p384 = por %p382, %p383
      %p385 = scmp.ne.s32.totalorder %s374, %s375
      %p386 = scmp.eq.s32.totalorder %s42, 0
      %p387 = por %p385, %p386
      %p388 = scmp.ne.s32.totalorder %s374, %s375
      %p389 = scmp.eq.s32.totalorder %s43, 3
      %p390 = por %p388, %p389
      %p392 = scmp.ne.s32.totalorder %s375, %s391
      %p393 = scmp.eq.s32.totalorder %s43, 0
      %p394 = por %p392, %p393
      %s395 = ssub.s32 %s45, %s52
      %p396 = scmp.eq.s32.totalorder %s395, 0
      %s398 = sadd.s32 %s397, 1
      %s399 = scalar_select %p396, %s397, %s398
      %p402 = pneg %p396
      %p403 = scmp.eq.s32.totalorder %s37, 3
      %p404 = por %p402, %p403
      %p405 = scmp.ne.s32.totalorder %s397, %s400
      %p406 = scmp.eq.s32.totalorder %s37, 0
      %p407 = por %p405, %p406
      %p408 = scmp.ne.s32.totalorder %s397, %s400
      %p409 = scmp.eq.s32.totalorder %s42, 3
      %p410 = por %p408, %p409
      %p411 = scmp.ne.s32.totalorder %s400, %s401
      %p412 = scmp.eq.s32.totalorder %s42, 0
      %p413 = por %p411, %p412
      %p414 = scmp.ne.s32.totalorder %s400, %s401
      %p415 = scmp.eq.s32.totalorder %s43, 3
      %p416 = por %p414, %p415
      %p418 = scmp.ne.s32.totalorder %s401, %s417
      %p419 = scmp.eq.s32.totalorder %s43, 0
      %p420 = por %p418, %p419
      %s421 = ssub.s32 %s45, %s52
      %p422 = scmp.eq.s32.totalorder %s421, 0
      %s424 = sadd.s32 %s423, 1
      %s425 = scalar_select %p422, %s423, %s424
      %p428 = pneg %p422
      %p429 = scmp.eq.s32.totalorder %s37, 3
      %p430 = por %p428, %p429
      %p431 = scmp.ne.s32.totalorder %s423, %s426
      %p432 = scmp.eq.s32.totalorder %s37, 0
      %p433 = por %p431, %p432
      %p434 = scmp.ne.s32.totalorder %s423, %s426
      %p435 = scmp.eq.s32.totalorder %s42, 3
      %p436 = por %p434, %p435
      %p437 = scmp.ne.s32.totalorder %s426, %s427
      %p438 = scmp.eq.s32.totalorder %s42, 0
      %p439 = por %p437, %p438
      %p440 = scmp.ne.s32.totalorder %s426, %s427
      %p441 = scmp.eq.s32.totalorder %s43, 3
      %p442 = por %p440, %p441
      %p444 = scmp.ne.s32.totalorder %s427, %s443
      %p445 = scmp.eq.s32.totalorder %s43, 0
      %p446 = por %p444, %p445
      %s447 = ssub.s32 %s45, %s52
      %p448 = scmp.eq.s32.totalorder %s447, 0
      %s450 = sadd.s32 %s449, 1
      %s451 = scalar_select %p448, %s449, %s450
      %p454 = pneg %p448
      %p455 = scmp.eq.s32.totalorder %s37, 3
      %p456 = por %p454, %p455
      %p457 = scmp.ne.s32.totalorder %s449, %s452
      %p458 = scmp.eq.s32.totalorder %s37, 0
      %p459 = por %p457, %p458
      %p460 = scmp.ne.s32.totalorder %s449, %s452
      %p461 = scmp.eq.s32.totalorder %s42, 3
      %p462 = por %p460, %p461
      %p463 = scmp.ne.s32.totalorder %s452, %s453
      %p464 = scmp.eq.s32.totalorder %s42, 0
      %p465 = por %p463, %p464
      %p466 = scmp.ne.s32.totalorder %s452, %s453
      %p467 = scmp.eq.s32.totalorder %s43, 3
      %p468 = por %p466, %p467
      %p470 = scmp.ne.s32.totalorder %s453, %s469
      %p471 = scmp.eq.s32.totalorder %s43, 0
      %p472 = por %p470, %p471
      %s473 = ssub.s32 %s45, %s52
      %p474 = scmp.eq.s32.totalorder %s473, 0
      %s476 = sadd.s32 %s475, 1
      %s477 = scalar_select %p474, %s475, %s476
      %p480 = pneg %p474
      %p481 = scmp.eq.s32.totalorder %s37, 3
      %p482 = por %p480, %p481
      %p483 = scmp.ne.s32.totalorder %s475, %s478
      %p484 = scmp.eq.s32.totalorder %s37, 0
      %p485 = por %p483, %p484
      %p486 = scmp.ne.s32.totalorder %s475, %s478
      %p487 = scmp.eq.s32.totalorder %s42, 3
      %p488 = por %p486, %p487
      %p489 = scmp.ne.s32.totalorder %s478, %s479
      %p490 = scmp.eq.s32.totalorder %s42, 0
      %p491 = por %p489, %p490
      %p492 = scmp.ne.s32.totalorder %s478, %s479
      %p493 = scmp.eq.s32.totalorder %s43, 3
      %p494 = por %p492, %p493
      %p496 = scmp.ne.s32.totalorder %s479, %s495
      %p497 = scmp.eq.s32.totalorder %s43, 0
      %p498 = por %p496, %p497
      %s499 = ssub.s32 %s44, %s56
      %p500 = scmp.eq.s32.totalorder %s499, 0
      %s502 = sadd.s32 %s501, 1
      %s503 = scalar_select %p500, %s501, %s502
      %p506 = pneg %p500
      %p507 = scmp.eq.s32.totalorder %s37, 3
      %p508 = por %p506, %p507
      %p509 = scmp.ne.s32.totalorder %s501, %s504
      %p510 = scmp.eq.s32.totalorder %s37, 0
      %p511 = por %p509, %p510
      %p512 = scmp.ne.s32.totalorder %s501, %s504
      %p513 = scmp.eq.s32.totalorder %s42, 3
      %p514 = por %p512, %p513
      %p515 = scmp.ne.s32.totalorder %s504, %s505
      %p516 = scmp.eq.s32.totalorder %s42, 0
      %p517 = por %p515, %p516
      %p518 = scmp.ne.s32.totalorder %s504, %s505
      %p519 = scmp.eq.s32.totalorder %s43, 3
      %p520 = por %p518, %p519
      %p522 = scmp.ne.s32.totalorder %s505, %s521
      %p523 = scmp.eq.s32.totalorder %s43, 0
      %p524 = por %p522, %p523
      %p525 = scmp.le.s32.totalorder 1, %s37
      %p526 = scmp.lt.s32.totalorder %s37, 5
      %p527 = pnand %p525, %p526
      %p528 = pneg %p527
      // Predicated region
      $region9: #{tpu_custom_call.1} parent=5 // pred_check
        _
      $region10: #{tpu_custom_call.1} parent=5 // pred_check_branch
        %530 = sbr.rel (%p527) target = $region12
      $region11: #{tpu_custom_call.1} parent=5 // pred_region
        %s531 = ssub.s32 %s37, 1
      $region12: #{tpu_custom_call.1} parent=5 // pred_fallthru
        _
      %p532 = scmp.lt.s32.totalorder %s37, 4
      // Predicated region
      $region13: #{tpu_custom_call.1} parent=5 // pred_check
        %p533 = pneg %p532
      $region14: #{tpu_custom_call.1} parent=5 // pred_check_branch
        %535 = sbr.rel (%p533) target = $region16
      $region15: #{tpu_custom_call.1} parent=5 // pred_region
        // Predicated region
        $region17: #{tpu_custom_call.1} parent=15 // pred_check
          %p536 = pneg %p69
        $region18: #{tpu_custom_call.1} parent=15 // pred_check_branch
          %538 = sbr.rel (%p536) target = $region20
        $region19: #{tpu_custom_call.1} parent=15 // pred_region
          %s539 = sand.u32 %s59, 1
          %s540 = scalar_lea.sflag [#allocation6], %s539
          %s541 = sand.u32 %s59, 1
          %s542 = smul.addr %s541, 8
          %s543 = scalar_lea.vmem [#allocation5], %s542
          %s545 = ssub.s32 128, 128
          %546 = vsyncadd %s540, %s545
          %s547 = smul.addr %s44, 128
          %s548 = scalar_lea.hbm %s1, %s547
          %s550 = sshll.u32 %s543, 4
          %s551 = int_to_ptr.vmem [resolvable:$true] %s550
          %553 = dma.hbm_to_vmem [thread:$0]  %s548, 128, %s551, %s540
        $region20: #{tpu_custom_call.1} parent=15 // pred_fallthru
          _
        // Predicated region
        $region21: #{tpu_custom_call.1} parent=15 // pred_check
          %p554 = pneg %p95
        $region22: #{tpu_custom_call.1} parent=15 // pred_check_branch
          %556 = sbr.rel (%p554) target = $region24
        $region23: #{tpu_custom_call.1} parent=15 // pred_region
          %p557 = scmp.lt.s32.totalorder %s45, 1
          %s558 = scalar_select %p557, %s45, 1
          %s559 = smul.addr %s558, 4
          %s560 = smul.addr %s559, 4
          %s561 = scalar_lea.vmem %s2, %s560
        $region24: #{tpu_custom_call.1} parent=15 // pred_fallthru
          _
        // Predicated region
        $region25: #{tpu_custom_call.1} parent=15 // pred_check
          %p562 = pneg %p121
        $region26: #{tpu_custom_call.1} parent=15 // pred_check_branch
          %564 = sbr.rel (%p562) target = $region28
        $region27: #{tpu_custom_call.1} parent=15 // pred_region
          %p565 = scmp.lt.s32.totalorder %s45, 1
          %s566 = scalar_select %p565, %s45, 1
          %s567 = scalar_lea.vmem %s3, %s566
        $region28: #{tpu_custom_call.1} parent=15 // pred_fallthru
          _
        // Predicated region
        $region29: #{tpu_custom_call.1} parent=15 // pred_check
          %p568 = pneg %p147
        $region30: #{tpu_custom_call.1} parent=15 // pred_check_branch
          %570 = sbr.rel (%p568) target = $region32
        $region31: #{tpu_custom_call.1} parent=15 // pred_region
          %p571 = scmp.lt.s32.totalorder %s45, 1
          %s572 = scalar_select %p571, %s45, 1
          %s573 = smul.addr %s572, 4
          %s574 = smul.addr %s573, 4
          %s575 = scalar_lea.vmem %s4, %s574
        $region32: #{tpu_custom_call.1} parent=15 // pred_fallthru
          _
        // Predicated region
        $region33: #{tpu_custom_call.1} parent=15 // pred_check
          %p576 = pneg %p173
        $region34: #{tpu_custom_call.1} parent=15 // pred_check_branch
          %578 = sbr.rel (%p576) target = $region36
        $region35: #{tpu_custom_call.1} parent=15 // pred_region
          %p579 = scmp.lt.s32.totalorder %s45, 1
          %s580 = scalar_select %p579, %s45, 1
          %s581 = scalar_lea.vmem %s5, %s580
        $region36: #{tpu_custom_call.1} parent=15 // pred_fallthru
          _
        // Predicated region
        $region37: #{tpu_custom_call.1} parent=15 // pred_check
          %p582 = pneg %p199
        $region38: #{tpu_custom_call.1} parent=15 // pred_check_branch
          %584 = sbr.rel (%p582) target = $region40
        $region39: #{tpu_custom_call.1} parent=15 // pred_region
          %p585 = scmp.lt.s32.totalorder %s45, 1
          %s586 = scalar_select %p585, %s45, 1
          %s587 = smul.addr %s586, 4
          %s588 = smul.addr %s587, 4
          %s589 = scalar_lea.vmem %s6, %s588
        $region40: #{tpu_custom_call.1} parent=15 // pred_fallthru
          _
        // Predicated region
        $region41: #{tpu_custom_call.1} parent=15 // pred_check
          %p590 = pneg %p225
        $region42: #{tpu_custom_call.1} parent=15 // pred_check_branch
          %592 = sbr.rel (%p590) target = $region44
        $region43: #{tpu_custom_call.1} parent=15 // pred_region
          %p593 = scmp.lt.s32.totalorder %s45, 1
          %s594 = scalar_select %p593, %s45, 1
          %s595 = scalar_lea.vmem %s7, %s594
        $region44: #{tpu_custom_call.1} parent=15 // pred_fallthru
          _
        // Predicated region
        $region45: #{tpu_custom_call.1} parent=15 // pred_check
          %p596 = pneg %p251
        $region46: #{tpu_custom_call.1} parent=15 // pred_check_branch
          %598 = sbr.rel (%p596) target = $region48
        $region47: #{tpu_custom_call.1} parent=15 // pred_region
          %s599 = sand.u32 %s37, 1
          %s600 = scalar_lea.sflag [#allocation9], %s599
          %s601 = sand.u32 %s241, 1
          %s602 = smul.addr %s601, 16
          %s603 = scalar_lea.vmem [#allocation8], %s602
          %s605 = ssub.s32 256, 256
          %606 = vsyncadd %s600, %s605
          %s607 = smul.addr %s45, 4
          %s608 = smul.addr %s607, 64
          %s609 = scalar_lea.hbm %s8, %s608
          %s610 = sshll.u32 %s603, 4
          %s611 = int_to_ptr.vmem [resolvable:$true] %s610
          %616 = dma.hbm_to_vmem [thread:$0]  %s609, 256, %s611, %s600, 64, 64, 4
        $region48: #{tpu_custom_call.1} parent=15 // pred_fallthru
          _
        // Predicated region
        $region49: #{tpu_custom_call.1} parent=15 // pred_check
          %p617 = pneg %p277
        $region50: #{tpu_custom_call.1} parent=15 // pred_check_branch
          %619 = sbr.rel (%p617) target = $region52
        $region51: #{tpu_custom_call.1} parent=15 // pred_region
          %p620 = scmp.lt.s32.totalorder %s45, 1
          %s621 = scalar_select %p620, %s45, 1
          %s622 = scalar_lea.vmem %s9, %s621
        $region52: #{tpu_custom_call.1} parent=15 // pred_fallthru
          _
        // Predicated region
        $region53: #{tpu_custom_call.1} parent=15 // pred_check
          %p623 = pneg %p303
        $region54: #{tpu_custom_call.1} parent=15 // pred_check_branch
          %625 = sbr.rel (%p623) target = $region56
        $region55: #{tpu_custom_call.1} parent=15 // pred_region
          %p626 = scmp.lt.s32.totalorder %s45, 1
          %s627 = scalar_select %p626, %s45, 1
          %s628 = scalar_lea.vmem %s10, %s627
        $region56: #{tpu_custom_call.1} parent=15 // pred_fallthru
          _
        // Predicated region
        $region57: #{tpu_custom_call.1} parent=15 // pred_check
          %p629 = pneg %p329
        $region58: #{tpu_custom_call.1} parent=15 // pred_check_branch
          %631 = sbr.rel (%p629) target = $region60
        $region59: #{tpu_custom_call.1} parent=15 // pred_region
          %p632 = scmp.lt.s32.totalorder %s45, 1
          %s633 = scalar_select %p632, %s45, 1
          %s634 = scalar_lea.vmem %s11, %s633
        $region60: #{tpu_custom_call.1} parent=15 // pred_fallthru
          _
        // Predicated region
        $region61: #{tpu_custom_call.1} parent=15 // pred_check
          %p635 = pneg %p355
        $region62: #{tpu_custom_call.1} parent=15 // pred_check_branch
          %637 = sbr.rel (%p635) target = $region64
        $region63: #{tpu_custom_call.1} parent=15 // pred_region
          %s638 = sand.u32 %s37, 1
          %s639 = scalar_lea.sflag [#allocation9], %s638
          %s640 = sand.u32 %s345, 1
          %s641 = smul.addr %s640, 16
          %s642 = scalar_lea.vmem [#allocation10], %s641
          %s644 = ssub.s32 256, 256
          %645 = vsyncadd %s639, %s644
          %s646 = smul.addr %s45, 4
          %s647 = smul.addr %s646, 64
          %s648 = scalar_lea.hbm %s12, %s647
          %s649 = sshll.u32 %s642, 4
          %s650 = int_to_ptr.vmem [resolvable:$true] %s649
          %655 = dma.hbm_to_vmem [thread:$0]  %s648, 256, %s650, %s639, 64, 64, 4
        $region64: #{tpu_custom_call.1} parent=15 // pred_fallthru
          _
        // Predicated region
        $region65: #{tpu_custom_call.1} parent=15 // pred_check
          %p656 = pneg %p381
        $region66: #{tpu_custom_call.1} parent=15 // pred_check_branch
          %658 = sbr.rel (%p656) target = $region68
        $region67: #{tpu_custom_call.1} parent=15 // pred_region
          %p659 = scmp.lt.s32.totalorder %s45, 1
          %s660 = scalar_select %p659, %s45, 1
          %s661 = scalar_lea.vmem %s13, %s660
        $region68: #{tpu_custom_call.1} parent=15 // pred_fallthru
          _
        // Predicated region
        $region69: #{tpu_custom_call.1} parent=15 // pred_check
          %p662 = pneg %p407
        $region70: #{tpu_custom_call.1} parent=15 // pred_check_branch
          %664 = sbr.rel (%p662) target = $region72
        $region71: #{tpu_custom_call.1} parent=15 // pred_region
          %p665 = scmp.lt.s32.totalorder %s45, 1
          %s666 = scalar_select %p665, %s45, 1
          %s667 = smul.addr %s666, 8
          %s668 = smul.addr %s667, 4
          %s669 = scalar_lea.vmem %s14, %s668
        $region72: #{tpu_custom_call.1} parent=15 // pred_fallthru
          _
        // Predicated region
        $region73: #{tpu_custom_call.1} parent=15 // pred_check
          %p670 = pneg %p433
        $region74: #{tpu_custom_call.1} parent=15 // pred_check_branch
          %672 = sbr.rel (%p670) target = $region76
        $region75: #{tpu_custom_call.1} parent=15 // pred_region
          %p673 = scmp.lt.s32.totalorder %s45, 1
          %s674 = scalar_select %p673, %s45, 1
          %s675 = scalar_lea.vmem %s15, %s674
        $region76: #{tpu_custom_call.1} parent=15 // pred_fallthru
          _
        // Predicated region
        $region77: #{tpu_custom_call.1} parent=15 // pred_check
          %p676 = pneg %p459
        $region78: #{tpu_custom_call.1} parent=15 // pred_check_branch
          %678 = sbr.rel (%p676) target = $region80
        $region79: #{tpu_custom_call.1} parent=15 // pred_region
          %p679 = scmp.lt.s32.totalorder %s45, 1
          %s680 = scalar_select %p679, %s45, 1
          %s681 = scalar_lea.vmem %s16, %s680
        $region80: #{tpu_custom_call.1} parent=15 // pred_fallthru
          _
        // Predicated region
        $region81: #{tpu_custom_call.1} parent=15 // pred_check
          %p682 = pneg %p485
        $region82: #{tpu_custom_call.1} parent=15 // pred_check_branch
          %684 = sbr.rel (%p682) target = $region84
        $region83: #{tpu_custom_call.1} parent=15 // pred_region
          %p685 = scmp.lt.s32.totalorder %s45, 1
          %s686 = scalar_select %p685, %s45, 1
          %s687 = scalar_lea.vmem %s17, %s686
        $region84: #{tpu_custom_call.1} parent=15 // pred_fallthru
          _
      $region16: #{tpu_custom_call.1} parent=5 // pred_fallthru
        _
      %p688 = scmp.le.s32.totalorder 1, %s37
      %p689 = scmp.lt.s32.totalorder %s37, 5
      %p690 = pnand %p688, %p689
      %p691 = pneg %p690
      // Predicated region
      $region85: #{tpu_custom_call.1} parent=5 // pred_check
        _
      $region86: #{tpu_custom_call.1} parent=5 // pred_check_branch
        %693 = sbr.rel (%p690) target = $region88
      $region87: #{tpu_custom_call.1} parent=5 // pred_region
        %s694 = ssub.s32 %s37, 1
        %s695 = sand.u32 %s62, 1
        %s696 = scalar_lea.sflag [#allocation6], %s695
        %s697 = sand.u32 %s62, 1
        %s698 = smul.addr %s697, 8
        %s699 = scalar_lea.vmem [#allocation5], %s698
        // Predicated region
        $region89: #{tpu_custom_call.1} parent=87 // pred_check
          %p700 = pneg %p75
        $region90: #{tpu_custom_call.1} parent=87 // pred_check_branch
          %702 = sbr.rel (%p700) target = $region92
        $region91: #{tpu_custom_call.1} parent=87 // pred_region
          %703 = dma.done %s696, 128
        $region92: #{tpu_custom_call.1} parent=87 // pred_fallthru
          _
        %s704 = sand.u32 %s42, 1
        %s705 = scalar_lea.sflag [#allocation9], %s704
        %s706 = sand.u32 %s244, 1
        %s707 = smul.addr %s706, 16
        %s708 = scalar_lea.vmem [#allocation8], %s707
        // Predicated region
        $region93: #{tpu_custom_call.1} parent=87 // pred_check
          %p709 = pneg %p257
        $region94: #{tpu_custom_call.1} parent=87 // pred_check_branch
          %711 = sbr.rel (%p709) target = $region96
        $region95: #{tpu_custom_call.1} parent=87 // pred_region
          %712 = dma.done %s705, 256
        $region96: #{tpu_custom_call.1} parent=87 // pred_fallthru
          _
        %s713 = sand.u32 %s42, 1
        %s714 = scalar_lea.sflag [#allocation9], %s713
        %s715 = sand.u32 %s348, 1
        %s716 = smul.addr %s715, 16
        %s717 = scalar_lea.vmem [#allocation10], %s716
        // Predicated region
        $region97: #{tpu_custom_call.1} parent=87 // pred_check
          %p718 = pneg %p361
        $region98: #{tpu_custom_call.1} parent=87 // pred_check_branch
          %720 = sbr.rel (%p718) target = $region100
        $region99: #{tpu_custom_call.1} parent=87 // pred_region
          %721 = dma.done %s714, 256
        $region100: #{tpu_custom_call.1} parent=87 // pred_fallthru
          _
        %s722 = sand.u32 %s62, 1
        %s723 = scalar_lea.sflag [#allocation6], %s722
        %s724 = sand.u32 %s62, 1
        %s725 = smul.addr %s724, 8
        %s726 = scalar_lea.vmem [#allocation5], %s725
        %p727 = pneg %p75
        %p728 = pneg %p72
        %p729 = scmp.lt.s32.totalorder %s47, 1
        %s730 = scalar_select %p729, %s47, 1
        %s731 = smul.addr %s730, 4
        %s732 = smul.addr %s731, 4
        %s733 = scalar_lea.vmem %s2, %s732
        %p734 = pneg %p101
        %p735 = pneg %p98
        %p736 = scmp.lt.s32.totalorder %s47, 1
        %s737 = scalar_select %p736, %s47, 1
        %s738 = scalar_lea.vmem %s3, %s737
        %p739 = pneg %p127
        %p740 = pneg %p124
        %p741 = scmp.lt.s32.totalorder %s47, 1
        %s742 = scalar_select %p741, %s47, 1
        %s743 = smul.addr %s742, 4
        %s744 = smul.addr %s743, 4
        %s745 = scalar_lea.vmem %s4, %s744
        %p746 = pneg %p153
        %p747 = pneg %p150
        %p748 = scmp.lt.s32.totalorder %s47, 1
        %s749 = scalar_select %p748, %s47, 1
        %s750 = scalar_lea.vmem %s5, %s749
        %p751 = pneg %p179
        %p752 = pneg %p176
        %p753 = scmp.lt.s32.totalorder %s47, 1
        %s754 = scalar_select %p753, %s47, 1
        %s755 = smul.addr %s754, 4
        %s756 = smul.addr %s755, 4
        %s757 = scalar_lea.vmem %s6, %s756
        %p758 = pneg %p205
        %p759 = pneg %p202
        %p760 = scmp.lt.s32.totalorder %s47, 1
        %s761 = scalar_select %p760, %s47, 1
        %s762 = scalar_lea.vmem %s7, %s761
        %p763 = pneg %p231
        %p764 = pneg %p228
        %s765 = sand.u32 %s42, 1
        %s766 = scalar_lea.sflag [#allocation9], %s765
        %s767 = sand.u32 %s244, 1
        %s768 = smul.addr %s767, 16
        %s769 = scalar_lea.vmem [#allocation8], %s768
        %p770 = pneg %p257
        %p771 = pneg %p254
        %p772 = scmp.lt.s32.totalorder %s47, 1
        %s773 = scalar_select %p772, %s47, 1
        %s774 = scalar_lea.vmem %s9, %s773
        %p775 = pneg %p283
        %p776 = pneg %p280
        %p777 = scmp.lt.s32.totalorder %s47, 1
        %s778 = scalar_select %p777, %s47, 1
        %s779 = scalar_lea.vmem %s10, %s778
        %p780 = pneg %p309
        %p781 = pneg %p306
        %p782 = scmp.lt.s32.totalorder %s47, 1
        %s783 = scalar_select %p782, %s47, 1
        %s784 = scalar_lea.vmem %s11, %s783
        %p785 = pneg %p335
        %p786 = pneg %p332
        %s787 = sand.u32 %s42, 1
        %s788 = scalar_lea.sflag [#allocation9], %s787
        %s789 = sand.u32 %s348, 1
        %s790 = smul.addr %s789, 16
        %s791 = scalar_lea.vmem [#allocation10], %s790
        %p792 = pneg %p361
        %p793 = pneg %p358
        %p794 = scmp.lt.s32.totalorder %s47, 1
        %s795 = scalar_select %p794, %s47, 1
        %s796 = scalar_lea.vmem %s13, %s795
        %p797 = pneg %p387
        %p798 = pneg %p384
        %p799 = scmp.lt.s32.totalorder %s47, 1
        %s800 = scalar_select %p799, %s47, 1
        %s801 = smul.addr %s800, 8
        %s802 = smul.addr %s801, 4
        %s803 = scalar_lea.vmem %s14, %s802
        %p804 = pneg %p413
        %p805 = pneg %p410
        %p806 = scmp.lt.s32.totalorder %s47, 1
        %s807 = scalar_select %p806, %s47, 1
        %s808 = scalar_lea.vmem %s15, %s807
        %p809 = pneg %p439
        %p810 = pneg %p436
        %p811 = scmp.lt.s32.totalorder %s47, 1
        %s812 = scalar_select %p811, %s47, 1
        %s813 = scalar_lea.vmem %s16, %s812
        %p814 = pneg %p465
        %p815 = pneg %p462
        %p816 = scmp.lt.s32.totalorder %s47, 1
        %s817 = scalar_select %p816, %s47, 1
        %s818 = scalar_lea.vmem %s17, %s817
        %p819 = pneg %p491
        %p820 = pneg %p488
        %p821 = pneg %p517
        %p822 = pneg %p514
        %s823 = sand.u32 %s504, 1
        %s824 = scalar_lea.sflag [#allocation7], %s823
        %s825 = sand.u32 %s504, 1
        %s826 = smul.addr %s825, 8
        %s827 = scalar_lea.vmem [#allocation11], %s826
        %p828 = scmp.lt.s32.totalorder %s47, 1
        %s829 = scalar_select %p828, %s47, 1
        %s830 = smul.addr %s829, 4
        %s831 = smul.addr %s830, 4
        %s832 = scalar_lea.vmem %s2, %s831
        %p833 = scmp.lt.s32.totalorder %s47, 1
        %s834 = scalar_select %p833, %s47, 1
        %s835 = scalar_lea.vmem %s3, %s834
        %p836 = scmp.lt.s32.totalorder %s47, 1
        %s837 = scalar_select %p836, %s47, 1
        %s838 = smul.addr %s837, 4
        %s839 = smul.addr %s838, 4
        %s840 = scalar_lea.vmem %s4, %s839
        %p841 = scmp.lt.s32.totalorder %s47, 1
        %s842 = scalar_select %p841, %s47, 1
        %s843 = scalar_lea.vmem %s5, %s842
        %p844 = scmp.lt.s32.totalorder %s47, 1
        %s845 = scalar_select %p844, %s47, 1
        %s846 = smul.addr %s845, 4
        %s847 = smul.addr %s846, 4
        %s848 = scalar_lea.vmem %s6, %s847
        %p849 = scmp.lt.s32.totalorder %s47, 1
        %s850 = scalar_select %p849, %s47, 1
        %s851 = scalar_lea.vmem %s7, %s850
        %p852 = scmp.lt.s32.totalorder %s47, 1
        %s853 = scalar_select %p852, %s47, 1
        %s854 = scalar_lea.vmem %s9, %s853
        %p855 = scmp.lt.s32.totalorder %s47, 1
        %s856 = scalar_select %p855, %s47, 1
        %s857 = scalar_lea.vmem %s10, %s856
        %p858 = scmp.lt.s32.totalorder %s47, 1
        %s859 = scalar_select %p858, %s47, 1
        %s860 = scalar_lea.vmem %s11, %s859
        %p861 = scmp.lt.s32.totalorder %s47, 1
        %s862 = scalar_select %p861, %s47, 1
        %s863 = scalar_lea.vmem %s13, %s862
        %p864 = scmp.lt.s32.totalorder %s47, 1
        %s865 = scalar_select %p864, %s47, 1
        %s866 = smul.addr %s865, 8
        %s867 = smul.addr %s866, 4
        %s868 = scalar_lea.vmem %s14, %s867
        %p869 = scmp.lt.s32.totalorder %s47, 1
        %s870 = scalar_select %p869, %s47, 1
        %s871 = scalar_lea.vmem %s15, %s870
        %p872 = scmp.lt.s32.totalorder %s47, 1
        %s873 = scalar_select %p872, %s47, 1
        %s874 = scalar_lea.vmem %s16, %s873
        %p875 = scmp.lt.s32.totalorder %s47, 1
        %s876 = scalar_select %p875, %s47, 1
        %s877 = scalar_lea.vmem %s17, %s876
        %p879 = scmp.eq.s32.totalorder %s47, 0
        // Predicated region
        $region101: #{tpu_custom_call.1} parent=87 // pred_check
          %p880 = pneg %p879
        $region102: #{tpu_custom_call.1} parent=87 // pred_check_branch
          %882 = sbr.rel (%p880) target = $region104
        $region103: #{tpu_custom_call.1} parent=87 // pred_region
          %v883 = vld [vmem:[%s699] sm:$0xff]
          %vm884 = vcmask 261120
          %885 = vst.msk [vmem:[#allocation2] sm:$0xff] %vm884, %v883
        $region104: #{tpu_custom_call.1} parent=87 // pred_fallthru
          _
        %v886 = vld [vmem:[#allocation2] sm:$0xff]
        %v887 = vpack.c.bf16 %v886, %v886
        %v888 = vld [vmem:[%s832] sm:$0xf]
        %v889 = vld [vmem:[%s832 + $0x4] sm:$0xf]
        %v890 = vld [vmem:[%s832 + $0x8] sm:$0xf]
        %v891 = vld [vmem:[%s832 + $0xc] sm:$0xf]
        %v892 = vld [vmem:[%s835] sm:$0x1]
        %v894 = vlaneseq
        %v895 = vshrl.u32 %v894, 7
        %v896 = vsub.s32 0, %v895
        %v897 = vrot.slane %v892, %v896
        %v903 = vunpack.c.l.b16 %v888
        %v904 = vunpack.c.l.b16 %v889
        %v905 = vunpack.c.l.b16 %v890
        %v906 = vunpack.c.l.b16 %v891
        %v907 = vpack.c.b16 %v904, %v903
        %v908 = vpack.c.b16 %v906, %v905
        %vm911 = vcmask 261120
        %v913 = vsel %vm911, %v887, 0
        %915 = vmatprep.subr.bf16.mxu0 0
        %916 = vmatpush1.bf16.msra.mxu0 %v907
        %917 = vmatprep.subr.bf16.mxu0 0
        %918 = vmatpush1.bf16.msra.mxu0 %v908
        %919 = vmatprep.subr.bf16.mxu0 0
        %920 = vmatpush1.bf16.msra.mxu0 0
        %921 = vmatprep.subr.bf16.mxu0 0
        %922 = vmatpush1.bf16.msra.mxu0 0
        %923 = vmatprep.subr.bf16.mxu0 0
        %924 = vmatpush1.bf16.msra.mxu0 0
        %925 = vmatprep.subr.bf16.mxu0 0
        %926 = vmatpush1.bf16.msra.mxu0 0
        %927 = vmatprep.subr.bf16.mxu0 0
        %928 = vmatpush1.bf16.msra.mxu0 0
        %929 = vmatprep.subr.bf16.mxu0 0
        %930 = vmatpush1.bf16.msra.mxu0 0
        %931 = vmatprep.subr.bf16.mxu0 0
        %932 = vmatpush1.bf16.msra.mxu0 0
        %933 = vmatprep.subr.bf16.mxu0 0
        %934 = vmatpush1.bf16.msra.mxu0 0
        %935 = vmatprep.subr.bf16.mxu0 0
        %936 = vmatpush1.bf16.msra.mxu0 0
        %937 = vmatprep.subr.bf16.mxu0 0
        %938 = vmatpush1.bf16.msra.mxu0 0
        %939 = vmatprep.subr.bf16.mxu0 0
        %940 = vmatpush1.bf16.msra.mxu0 0
        %941 = vmatprep.subr.bf16.mxu0 0
        %942 = vmatpush1.bf16.msra.mxu0 0
        %943 = vmatprep.subr.bf16.mxu0 0
        %944 = vmatpush1.bf16.msra.mxu0 0
        %945 = vmatprep.subr.bf16.mxu0 0
        %946 = vmatpush1.bf16.msra.mxu0 0
        %947 = vmatprep.mubr.bf16.mxu0 0
        %948 = vmatmul.mubr.bf16.gmra.mrb[0].mxu0 %v913
        %v949 = vpop.f32.mrb[0].mxu0
        %v950 = vadd.f32 %v897, %v949
        %v951 = vpop.f32.mrb[0].mxu0
        %v952 = vpop.f32.mrb[0].mxu0
        %v953 = vpop.f32.mrb[0].mxu0
        %954 = vdwg.mxu0
        %v955 = vld [vmem:[%s840] sm:$0xf]
        %v956 = vld [vmem:[%s840 + $0x4] sm:$0xf]
        %v957 = vld [vmem:[%s840 + $0x8] sm:$0xf]
        %v958 = vld [vmem:[%s840 + $0xc] sm:$0xf]
        %v959 = vld [vmem:[%s843] sm:$0x1]
        %v961 = vlaneseq
        %v962 = vshrl.u32 %v961, 7
        %v963 = vsub.s32 0, %v962
        %v964 = vrot.slane %v959, %v963
        %v970 = vunpack.c.l.b16 %v955
        %v971 = vunpack.c.l.b16 %v956
        %v972 = vunpack.c.l.b16 %v957
        %v973 = vunpack.c.l.b16 %v958
        %v974 = vpack.c.b16 %v971, %v970
        %v975 = vpack.c.b16 %v973, %v972
        %978 = vmatprep.subr.bf16.mxu0 0
        %979 = vmatpush1.bf16.msra.mxu0 %v974
        %980 = vmatprep.subr.bf16.mxu0 0
        %981 = vmatpush1.bf16.msra.mxu0 %v975
        %982 = vmatprep.subr.bf16.mxu0 0
        %983 = vmatpush1.bf16.msra.mxu0 0
        %984 = vmatprep.subr.bf16.mxu0 0
        %985 = vmatpush1.bf16.msra.mxu0 0
        %986 = vmatprep.subr.bf16.mxu0 0
        %987 = vmatpush1.bf16.msra.mxu0 0
        %988 = vmatprep.subr.bf16.mxu0 0
        %989 = vmatpush1.bf16.msra.mxu0 0
        %990 = vmatprep.subr.bf16.mxu0 0
        %991 = vmatpush1.bf16.msra.mxu0 0
        %992 = vmatprep.subr.bf16.mxu0 0
        %993 = vmatpush1.bf16.msra.mxu0 0
        %994 = vmatprep.subr.bf16.mxu0 0
        %995 = vmatpush1.bf16.msra.mxu0 0
        %996 = vmatprep.subr.bf16.mxu0 0
        %997 = vmatpush1.bf16.msra.mxu0 0
        %998 = vmatprep.subr.bf16.mxu0 0
        %999 = vmatpush1.bf16.msra.mxu0 0
        %1000 = vmatprep.subr.bf16.mxu0 0
        %1001 = vmatpush1.bf16.msra.mxu0 0
        %1002 = vmatprep.subr.bf16.mxu0 0
        %1003 = vmatpush1.bf16.msra.mxu0 0
        %1004 = vmatprep.subr.bf16.mxu0 0
        %1005 = vmatpush1.bf16.msra.mxu0 0
        %1006 = vmatprep.subr.bf16.mxu0 0
        %1007 = vmatpush1.bf16.msra.mxu0 0
        %1008 = vmatprep.subr.bf16.mxu0 0
        %1009 = vmatpush1.bf16.msra.mxu0 0
        %1010 = vmatprep.mubr.bf16.mxu0 0
        %1011 = vmatmul.mubr.bf16.gmra.mrb[0].mxu0 %v913
        %v1012 = vpop.f32.mrb[0].mxu0
        %v1013 = vadd.f32 %v964, %v1012
        %v1014 = vpop.f32.mrb[0].mxu0
        %v1015 = vpop.f32.mrb[0].mxu0
        %v1016 = vpop.f32.mrb[0].mxu0
        %1017 = vdwg.mxu0
        %v1018 = vld [vmem:[%s848] sm:$0xf]
        %v1019 = vld [vmem:[%s848 + $0x4] sm:$0xf]
        %v1020 = vld [vmem:[%s848 + $0x8] sm:$0xf]
        %v1021 = vld [vmem:[%s848 + $0xc] sm:$0xf]
        %v1022 = vld [vmem:[%s851] sm:$0x1]
        %v1024 = vlaneseq
        %v1025 = vshrl.u32 %v1024, 7
        %v1026 = vsub.s32 0, %v1025
        %v1027 = vrot.slane %v1022, %v1026
        %v1033 = vunpack.c.l.b16 %v1018
        %v1034 = vunpack.c.l.b16 %v1019
        %v1035 = vunpack.c.l.b16 %v1020
        %v1036 = vunpack.c.l.b16 %v1021
        %v1037 = vpack.c.b16 %v1034, %v1033
        %v1038 = vpack.c.b16 %v1036, %v1035
        %1041 = vmatprep.subr.bf16.mxu0 0
        %1042 = vmatpush1.bf16.msra.mxu0 %v1037
        %1043 = vmatprep.subr.bf16.mxu0 0
        %1044 = vmatpush1.bf16.msra.mxu0 %v1038
        %1045 = vmatprep.subr.bf16.mxu0 0
        %1046 = vmatpush1.bf16.msra.mxu0 0
        %1047 = vmatprep.subr.bf16.mxu0 0
        %1048 = vmatpush1.bf16.msra.mxu0 0
        %1049 = vmatprep.subr.bf16.mxu0 0
        %1050 = vmatpush1.bf16.msra.mxu0 0
        %1051 = vmatprep.subr.bf16.mxu0 0
        %1052 = vmatpush1.bf16.msra.mxu0 0
        %1053 = vmatprep.subr.bf16.mxu0 0
        %1054 = vmatpush1.bf16.msra.mxu0 0
        %1055 = vmatprep.subr.bf16.mxu0 0
        %1056 = vmatpush1.bf16.msra.mxu0 0
        %1057 = vmatprep.subr.bf16.mxu0 0
        %1058 = vmatpush1.bf16.msra.mxu0 0
        %1059 = vmatprep.subr.bf16.mxu0 0
        %1060 = vmatpush1.bf16.msra.mxu0 0
        %1061 = vmatprep.subr.bf16.mxu0 0
        %1062 = vmatpush1.bf16.msra.mxu0 0
        %1063 = vmatprep.subr.bf16.mxu0 0
        %1064 = vmatpush1.bf16.msra.mxu0 0
        %1065 = vmatprep.subr.bf16.mxu0 0
        %1066 = vmatpush1.bf16.msra.mxu0 0
        %1067 = vmatprep.subr.bf16.mxu0 0
        %1068 = vmatpush1.bf16.msra.mxu0 0
        %1069 = vmatprep.subr.bf16.mxu0 0
        %1070 = vmatpush1.bf16.msra.mxu0 0
        %1071 = vmatprep.subr.bf16.mxu0 0
        %1072 = vmatpush1.bf16.msra.mxu0 0
        %1073 = vmatprep.mubr.bf16.mxu0 0
        %1074 = vmatmul.mubr.bf16.gmra.mrb[0].mxu0 %v913
        %v1075 = vpop.f32.mrb[0].mxu0
        %v1076 = vadd.f32 %v1027, %v1075
        %v1077 = vpop.f32.mrb[0].mxu0
        %v1078 = vpop.f32.mrb[0].mxu0
        %v1079 = vpop.f32.mrb[0].mxu0
        %1080 = vdwg.mxu0
        %v1081 = vpack.c.bf16 %v950, %v950
        %v1082 = vpack.c.bf16 %v1013, %v1013
        %v1083 = vpack.c.bf16 %v1076, %v1076
        %v1084 = vlaneseq
        %v1085 = vand.u32 %v1084, 127
        %s1086 = sld [smem:[#allocation4 + %s46]]
        %v1087 = vstv %s1086
        %vm1088 = vcmp.lt.s32.totalorder %v1085, %v1087
        %v1089 = vsel %vm1088, 1.0, 0.0
        %vm1090 = vcmask 130048
        %v1092 = vsel %vm1090, %v1081, 0
        %v1095 = vsel %vm1090, %v1082, 0
        %1097 = vmatprep.subr.bf16.mxu0 0
        %1098 = vmatpush1.bf16.xpose.msra.mxu0 %v1095
        %1099 = vmatprep.subr.bf16.mxu0 0
        %1100 = vmatpush1.bf16.xpose.msra.mxu0 0
        %1101 = vmatprep.subr.bf16.mxu0 0
        %1102 = vmatpush1.bf16.xpose.msra.mxu0 0
        %1103 = vmatprep.subr.bf16.mxu0 0
        %1104 = vmatpush1.bf16.xpose.msra.mxu0 0
        %1105 = vmatprep.subr.bf16.mxu0 0
        %1106 = vmatpush1.bf16.xpose.msra.mxu0 0
        %1107 = vmatprep.subr.bf16.mxu0 0
        %1108 = vmatpush1.bf16.xpose.msra.mxu0 0
        %1109 = vmatprep.subr.bf16.mxu0 0
        %1110 = vmatpush1.bf16.xpose.msra.mxu0 0
        %1111 = vmatprep.subr.bf16.mxu0 0
        %1112 = vmatpush1.bf16.xpose.msra.mxu0 0
        %1113 = vmatprep.subr.bf16.mxu0 0
        %1114 = vmatpush1.bf16.xpose.msra.mxu0 0
        %1115 = vmatprep.subr.bf16.mxu0 0
        %1116 = vmatpush1.bf16.xpose.msra.mxu0 0
        %1117 = vmatprep.subr.bf16.mxu0 0
        %1118 = vmatpush1.bf16.xpose.msra.mxu0 0
        %1119 = vmatprep.subr.bf16.mxu0 0
        %1120 = vmatpush1.bf16.xpose.msra.mxu0 0
        %1121 = vmatprep.subr.bf16.mxu0 0
        %1122 = vmatpush1.bf16.xpose.msra.mxu0 0
        %1123 = vmatprep.subr.bf16.mxu0 0
        %1124 = vmatpush1.bf16.xpose.msra.mxu0 0
        %1125 = vmatprep.subr.bf16.mxu0 0
        %1126 = vmatpush1.bf16.xpose.msra.mxu0 0
        %1127 = vmatprep.subr.bf16.mxu0 0
        %1128 = vmatpush1.bf16.xpose.msra.mxu0 0
        %1129 = vmatprep.mubr.bf16.mxu0 0
        %1130 = vmatmul.mubr.bf16.gmra.mrb[0].mxu0 %v1092
        %v1131 = vpop.f32.mrb[0].mxu0
        %v1132 = vadd.f32 0.0, %v1131
        %v1133 = vpop.f32.mrb[0].mxu0
        %v1134 = vpop.f32.mrb[0].mxu0
        %v1135 = vpop.f32.mrb[0].mxu0
        %1136 = vdwg.mxu0
        %vm1137 = vcmp.gt.f32.partialorder %v1089, 0.5
        %v1138 = vsel %vm1137, 1, 0
        %vm1139 = vcmp.eq.s32.totalorder %v1138, 1
        %v1140 = vsel %vm1139, %v1132, -1000000.0
        %vm1141 = vcmask 64512
        %v1142 = vsel %vm1141, %v1140, -inf
        %1143 = vmax.xlane.f32.xlu0 %v1142
        %v1144 = vpop.xlane.xlu0 %1143
        %v1145 = vsub.f32 %v1140, %v1144
        %v1146 = vmul.f32 %v1145, 1.442695
        %v1147 = vpow.pop %v1146
        %v1148 = vsel %vm1141, %v1147, 0.0
        %1149 = vadd.xlane.f32.xlu0 %v1148
        %v1150 = vpop.xlane.xlu0 %1149
        %v1151 = vrcp.pop %v1150
        %v1152 = vmul.f32 %v1147, %v1151
        %v1153 = vpack.c.bf16 %v1152, %v1152
        %v1155 = vsel %vm1141, %v1153, 0
        %vm1157 = vcmask 1043456
        %v1159 = vsel %vm1157, %v1083, 0
        %1161 = vmatprep.subr.bf16.mxu0 0
        %1162 = vmatpush1.bf16.msra.mxu0 %v1159
        %1163 = vmatprep.subr.bf16.mxu0 0
        %1164 = vmatpush1.bf16.msra.mxu0 0
        %1165 = vmatprep.subr.bf16.mxu0 0
        %1166 = vmatpush1.bf16.msra.mxu0 0
        %1167 = vmatprep.subr.bf16.mxu0 0
        %1168 = vmatpush1.bf16.msra.mxu0 0
        %1169 = vmatprep.subr.bf16.mxu0 0
        %1170 = vmatpush1.bf16.msra.mxu0 0
        %1171 = vmatprep.subr.bf16.mxu0 0
        %1172 = vmatpush1.bf16.msra.mxu0 0
        %1173 = vmatprep.subr.bf16.mxu0 0
        %1174 = vmatpush1.bf16.msra.mxu0 0
        %1175 = vmatprep.subr.bf16.mxu0 0
        %1176 = vmatpush1.bf16.msra.mxu0 0
        %1177 = vmatprep.subr.bf16.mxu0 0
        %1178 = vmatpush1.bf16.msra.mxu0 0
        %1179 = vmatprep.subr.bf16.mxu0 0
        %1180 = vmatpush1.bf16.msra.mxu0 0
        %1181 = vmatprep.subr.bf16.mxu0 0
        %1182 = vmatpush1.bf16.msra.mxu0 0
        %1183 = vmatprep.subr.bf16.mxu0 0
        %1184 = vmatpush1.bf16.msra.mxu0 0
        %1185 = vmatprep.subr.bf16.mxu0 0
        %1186 = vmatpush1.bf16.msra.mxu0 0
        %1187 = vmatprep.subr.bf16.mxu0 0
        %1188 = vmatpush1.bf16.msra.mxu0 0
        %1189 = vmatprep.subr.bf16.mxu0 0
        %1190 = vmatpush1.bf16.msra.mxu0 0
        %1191 = vmatprep.subr.bf16.mxu0 0
        %1192 = vmatpush1.bf16.msra.mxu0 0
        %1193 = vmatprep.mubr.bf16.mxu0 0
        %1194 = vmatmul.mubr.bf16.gmra.mrb[0].mxu0 %v1155
        %v1195 = vpop.f32.mrb[0].mxu0
        %v1196 = vadd.f32 0.0, %v1195
        %v1197 = vpop.f32.mrb[0].mxu0
        %v1198 = vpop.f32.mrb[0].mxu0
        %v1199 = vpop.f32.mrb[0].mxu0
        %1200 = vdwg.mxu0
        %1202 = vrot.lane.b32.xlu0 %v1081, 112
        %v1203 = vpop.permute.xlu0 %1202
        %1205 = vrot.lane.b32.xlu0 %v1082, 112
        %v1206 = vpop.permute.xlu0 %1205
        %v1208 = vsel %vm1090, %v1203, 0
        %v1211 = vsel %vm1090, %v1206, 0
        %1213 = vmatprep.subr.bf16.mxu0 0
        %1214 = vmatpush1.bf16.xpose.msra.mxu0 %v1211
        %1215 = vmatprep.subr.bf16.mxu0 0
        %1216 = vmatpush1.bf16.xpose.msra.mxu0 0
        %1217 = vmatprep.subr.bf16.mxu0 0
        %1218 = vmatpush1.bf16.xpose.msra.mxu0 0
        %1219 = vmatprep.subr.bf16.mxu0 0
        %1220 = vmatpush1.bf16.xpose.msra.mxu0 0
        %1221 = vmatprep.subr.bf16.mxu0 0
        %1222 = vmatpush1.bf16.xpose.msra.mxu0 0
        %1223 = vmatprep.subr.bf16.mxu0 0
        %1224 = vmatpush1.bf16.xpose.msra.mxu0 0
        %1225 = vmatprep.subr.bf16.mxu0 0
        %1226 = vmatpush1.bf16.xpose.msra.mxu0 0
        %1227 = vmatprep.subr.bf16.mxu0 0
        %1228 = vmatpush1.bf16.xpose.msra.mxu0 0
        %1229 = vmatprep.subr.bf16.mxu0 0
        %1230 = vmatpush1.bf16.xpose.msra.mxu0 0
        %1231 = vmatprep.subr.bf16.mxu0 0
        %1232 = vmatpush1.bf16.xpose.msra.mxu0 0
        %1233 = vmatprep.subr.bf16.mxu0 0
        %1234 = vmatpush1.bf16.xpose.msra.mxu0 0
        %1235 = vmatprep.subr.bf16.mxu0 0
        %1236 = vmatpush1.bf16.xpose.msra.mxu0 0
        %1237 = vmatprep.subr.bf16.mxu0 0
        %1238 = vmatpush1.bf16.xpose.msra.mxu0 0
        %1239 = vmatprep.subr.bf16.mxu0 0
        %1240 = vmatpush1.bf16.xpose.msra.mxu0 0
        %1241 = vmatprep.subr.bf16.mxu0 0
        %1242 = vmatpush1.bf16.xpose.msra.mxu0 0
        %1243 = vmatprep.subr.bf16.mxu0 0
        %1244 = vmatpush1.bf16.xpose.msra.mxu0 0
        %1245 = vmatprep.mubr.bf16.mxu0 0
        %1246 = vmatmul.mubr.bf16.gmra.mrb[0].mxu0 %v1208
        %v1247 = vpop.f32.mrb[0].mxu0
        %v1248 = vadd.f32 0.0, %v1247
        %v1249 = vpop.f32.mrb[0].mxu0
        %v1250 = vpop.f32.mrb[0].mxu0
        %v1251 = vpop.f32.mrb[0].mxu0
        %1252 = vdwg.mxu0
        %v1253 = vsel %vm1139, %v1248, -1000000.0
        %v1254 = vsel %vm1141, %v1253, -inf
        %1255 = vmax.xlane.f32.xlu0 %v1254
        %v1256 = vpop.xlane.xlu0 %1255
        %v1257 = vsub.f32 %v1253, %v1256
        %v1258 = vmul.f32 %v1257, 1.442695
        %v1259 = vpow.pop %v1258
        %v1260 = vsel %vm1141, %v1259, 0.0
        %1261 = vadd.xlane.f32.xlu0 %v1260
        %v1262 = vpop.xlane.xlu0 %1261
        %v1263 = vrcp.pop %v1262
        %v1264 = vmul.f32 %v1259, %v1263
        %v1265 = vpack.c.bf16 %v1264, %v1264
        %1267 = vrot.lane.b32.xlu0 %v1083, 112
        %v1268 = vpop.permute.xlu0 %1267
        %v1270 = vsel %vm1141, %v1265, 0
        %v1273 = vsel %vm1157, %v1268, 0
        %1275 = vmatprep.subr.bf16.mxu0 0
        %1276 = vmatpush1.bf16.msra.mxu0 %v1273
        %1277 = vmatprep.subr.bf16.mxu0 0
        %1278 = vmatpush1.bf16.msra.mxu0 0
        %1279 = vmatprep.subr.bf16.mxu0 0
        %1280 = vmatpush1.bf16.msra.mxu0 0
        %1281 = vmatprep.subr.bf16.mxu0 0
        %1282 = vmatpush1.bf16.msra.mxu0 0
        %1283 = vmatprep.subr.bf16.mxu0 0
        %1284 = vmatpush1.bf16.msra.mxu0 0
        %1285 = vmatprep.subr.bf16.mxu0 0
        %1286 = vmatpush1.bf16.msra.mxu0 0
        %1287 = vmatprep.subr.bf16.mxu0 0
        %1288 = vmatpush1.bf16.msra.mxu0 0
        %1289 = vmatprep.subr.bf16.mxu0 0
        %1290 = vmatpush1.bf16.msra.mxu0 0
        %1291 = vmatprep.subr.bf16.mxu0 0
        %1292 = vmatpush1.bf16.msra.mxu0 0
        %1293 = vmatprep.subr.bf16.mxu0 0
        %1294 = vmatpush1.bf16.msra.mxu0 0
        %1295 = vmatprep.subr.bf16.mxu0 0
        %1296 = vmatpush1.bf16.msra.mxu0 0
        %1297 = vmatprep.subr.bf16.mxu0 0
        %1298 = vmatpush1.bf16.msra.mxu0 0
        %1299 = vmatprep.subr.bf16.mxu0 0
        %1300 = vmatpush1.bf16.msra.mxu0 0
        %1301 = vmatprep.subr.bf16.mxu0 0
        %1302 = vmatpush1.bf16.msra.mxu0 0
        %1303 = vmatprep.subr.bf16.mxu0 0
        %1304 = vmatpush1.bf16.msra.mxu0 0
        %1305 = vmatprep.subr.bf16.mxu0 0
        %1306 = vmatpush1.bf16.msra.mxu0 0
        %1307 = vmatprep.mubr.bf16.mxu0 0
        %1308 = vmatmul.mubr.bf16.gmra.mrb[0].mxu0 %v1270
        %v1309 = vpop.f32.mrb[0].mxu0
        %v1310 = vadd.f32 0.0, %v1309
        %v1311 = vpop.f32.mrb[0].mxu0
        %v1312 = vpop.f32.mrb[0].mxu0
        %v1313 = vpop.f32.mrb[0].mxu0
        %1314 = vdwg.mxu0
        %1316 = vrot.lane.b32.xlu0 %v1310, 16
        %v1317 = vpop.permute.xlu0 %1316
        %v1319 = vsel %vm1090, %v1196, %v1317
        %v1320 = vpack.c.bf16 %v1319, %v1319
        %v1321 = vld [vmem:[%s708] sm:$0xf]
        %v1322 = vld [vmem:[%s708 + $0x4] sm:$0xf]
        %v1323 = vld [vmem:[%s708 + $0x8] sm:$0xf]
        %v1324 = vld [vmem:[%s708 + $0xc] sm:$0xf]
        %v1325 = vld [vmem:[%s854] sm:$0x1]
        %v1327 = vlaneseq
        %v1328 = vshrl.u32 %v1327, 7
        %v1329 = vsub.s32 0, %v1328
        %v1330 = vrot.slane %v1325, %v1329
        %v1336 = vunpack.c.l.b16 %v1321
        %v1337 = vunpack.c.l.b16 %v1322
        %v1338 = vunpack.c.l.b16 %v1323
        %v1339 = vunpack.c.l.b16 %v1324
        %v1340 = vpack.c.b16 %v1337, %v1336
        %v1341 = vpack.c.b16 %v1339, %v1338
        %v1345 = vsel %vm911, %v1320, 0
        %1347 = vmatprep.subr.bf16.mxu0 0
        %1348 = vmatpush1.bf16.msra.mxu0 %v1340
        %1349 = vmatprep.subr.bf16.mxu0 0
        %1350 = vmatpush1.bf16.msra.mxu0 %v1341
        %1351 = vmatprep.subr.bf16.mxu0 0
        %1352 = vmatpush1.bf16.msra.mxu0 0
        %1353 = vmatprep.subr.bf16.mxu0 0
        %1354 = vmatpush1.bf16.msra.mxu0 0
        %1355 = vmatprep.subr.bf16.mxu0 0
        %1356 = vmatpush1.bf16.msra.mxu0 0
        %1357 = vmatprep.subr.bf16.mxu0 0
        %1358 = vmatpush1.bf16.msra.mxu0 0
        %1359 = vmatprep.subr.bf16.mxu0 0
        %1360 = vmatpush1.bf16.msra.mxu0 0
        %1361 = vmatprep.subr.bf16.mxu0 0
        %1362 = vmatpush1.bf16.msra.mxu0 0
        %1363 = vmatprep.subr.bf16.mxu0 0
        %1364 = vmatpush1.bf16.msra.mxu0 0
        %1365 = vmatprep.subr.bf16.mxu0 0
        %1366 = vmatpush1.bf16.msra.mxu0 0
        %1367 = vmatprep.subr.bf16.mxu0 0
        %1368 = vmatpush1.bf16.msra.mxu0 0
        %1369 = vmatprep.subr.bf16.mxu0 0
        %1370 = vmatpush1.bf16.msra.mxu0 0
        %1371 = vmatprep.subr.bf16.mxu0 0
        %1372 = vmatpush1.bf16.msra.mxu0 0
        %1373 = vmatprep.subr.bf16.mxu0 0
        %1374 = vmatpush1.bf16.msra.mxu0 0
        %1375 = vmatprep.subr.bf16.mxu0 0
        %1376 = vmatpush1.bf16.msra.mxu0 0
        %1377 = vmatprep.subr.bf16.mxu0 0
        %1378 = vmatpush1.bf16.msra.mxu0 0
        %1379 = vmatprep.mubr.bf16.mxu0 0
        %1380 = vmatmul.mubr.bf16.gmra.mrb[0].mxu0 %v1345
        %v1381 = vpop.f32.mrb[0].mxu0
        %v1382 = vadd.f32 %v1330, %v1381
        %v1383 = vpop.f32.mrb[0].mxu0
        %v1384 = vpop.f32.mrb[0].mxu0
        %v1385 = vpop.f32.mrb[0].mxu0
        %1386 = vdwg.mxu0
        %v1387 = vadd.f32 %v886, %v1382
        %v1388 = vld [vmem:[%s857] sm:$0x1]
        %v1389 = vld [vmem:[%s860] sm:$0x1]
        %v1390 = vsel %vm911, %v1387, 0.0
        %1391 = vadd.xlane.f32.xlu0 %v1390
        %v1392 = vpop.xlane.xlu0 %1391
        %v1393 = vrcp.pop 32.0
        %v1394 = vmul.f32 %v1392, %v1393
        %v1395 = vsub.f32 %v1387, %v1394
        %v1396 = vmul.f32 %v1395, %v1395
        %v1397 = vsel %vm911, %v1396, 0.0
        %1398 = vadd.xlane.f32.xlu0 %v1397
        %v1399 = vpop.xlane.xlu0 %1398
        %v1400 = vmul.f32 %v1399, %v1393
        %v1401 = vadd.f32 %v1400, 1e-05
        %v1402 = vrsqrt.pop %v1401
        %v1403 = vmul.f32 %v1395, %v1402
        %v1405 = vlaneseq
        %v1406 = vshrl.u32 %v1405, 7
        %v1407 = vsub.s32 0, %v1406
        %v1408 = vrot.slane %v1388, %v1407
        %v1410 = vmul.f32 %v1403, %v1408
        %v1412 = vlaneseq
        %v1413 = vshrl.u32 %v1412, 7
        %v1414 = vsub.s32 0, %v1413
        %v1415 = vrot.slane %v1389, %v1414
        %v1417 = vadd.f32 %v1410, %v1415
        %v1418 = vpack.c.bf16 %v1417, %v1417
        %v1419 = vld [vmem:[%s717] sm:$0xf]
        %v1420 = vld [vmem:[%s717 + $0x4] sm:$0xf]
        %v1421 = vld [vmem:[%s717 + $0x8] sm:$0xf]
        %v1422 = vld [vmem:[%s717 + $0xc] sm:$0xf]
        %v1423 = vld [vmem:[%s863] sm:$0x1]
        %v1425 = vlaneseq
        %v1426 = vshrl.u32 %v1425, 7
        %v1427 = vsub.s32 0, %v1426
        %v1428 = vrot.slane %v1423, %v1427
        %v1434 = vunpack.c.l.b16 %v1419
        %v1435 = vunpack.c.l.b16 %v1420
        %v1436 = vunpack.c.l.b16 %v1421
        %v1437 = vunpack.c.l.b16 %v1422
        %v1438 = vpack.c.b16 %v1435, %v1434
        %v1439 = vpack.c.b16 %v1437, %v1436
        %v1443 = vsel %vm911, %v1418, 0
        %1445 = vmatprep.subr.bf16.mxu0 0
        %1446 = vmatpush1.bf16.msra.mxu0 %v1438
        %1447 = vmatprep.subr.bf16.mxu0 0
        %1448 = vmatpush1.bf16.msra.mxu0 %v1439
        %1449 = vmatprep.subr.bf16.mxu0 0
        %1450 = vmatpush1.bf16.msra.mxu0 0
        %1451 = vmatprep.subr.bf16.mxu0 0
        %1452 = vmatpush1.bf16.msra.mxu0 0
        %1453 = vmatprep.subr.bf16.mxu0 0
        %1454 = vmatpush1.bf16.msra.mxu0 0
        %1455 = vmatprep.subr.bf16.mxu0 0
        %1456 = vmatpush1.bf16.msra.mxu0 0
        %1457 = vmatprep.subr.bf16.mxu0 0
        %1458 = vmatpush1.bf16.msra.mxu0 0
        %1459 = vmatprep.subr.bf16.mxu0 0
        %1460 = vmatpush1.bf16.msra.mxu0 0
        %1461 = vmatprep.subr.bf16.mxu0 0
        %1462 = vmatpush1.bf16.msra.mxu0 0
        %1463 = vmatprep.subr.bf16.mxu0 0
        %1464 = vmatpush1.bf16.msra.mxu0 0
        %1465 = vmatprep.subr.bf16.mxu0 0
        %1466 = vmatpush1.bf16.msra.mxu0 0
        %1467 = vmatprep.subr.bf16.mxu0 0
        %1468 = vmatpush1.bf16.msra.mxu0 0
        %1469 = vmatprep.subr.bf16.mxu0 0
        %1470 = vmatpush1.bf16.msra.mxu0 0
        %1471 = vmatprep.subr.bf16.mxu0 0
        %1472 = vmatpush1.bf16.msra.mxu0 0
        %1473 = vmatprep.subr.bf16.mxu0 0
        %1474 = vmatpush1.bf16.msra.mxu0 0
        %1475 = vmatprep.subr.bf16.mxu0 0
        %1476 = vmatpush1.bf16.msra.mxu0 0
        %1477 = vmatprep.mubr.bf16.mxu0 0
        %1478 = vmatmul.mubr.bf16.gmra.mrb[0].mxu0 %v1443
        %v1479 = vpop.f32.mrb[0].mxu0
        %v1480 = vadd.f32 %v1428, %v1479
        %v1481 = vpop.f32.mrb[0].mxu0
        %v1482 = vpop.f32.mrb[0].mxu0
        %v1483 = vpop.f32.mrb[0].mxu0
        %1484 = vdwg.mxu0
        %v1485 = vmax.f32 %v1480, 0.0
        %v1486 = vpack.c.bf16 %v1485, %v1485
        %v1487 = vld [vmem:[%s868] sm:$0xf]
        %v1488 = vld [vmem:[%s868 + $0x4] sm:$0xf]
        %v1489 = vld [vmem:[%s868 + $0x8] sm:$0xf]
        %v1490 = vld [vmem:[%s868 + $0xc] sm:$0xf]
        %v1491 = vld [vmem:[%s868 + $0x10] sm:$0xf]
        %v1492 = vld [vmem:[%s868 + $0x14] sm:$0xf]
        %v1493 = vld [vmem:[%s868 + $0x18] sm:$0xf]
        %v1494 = vld [vmem:[%s868 + $0x1c] sm:$0xf]
        %v1495 = vld [vmem:[%s871] sm:$0x1]
        %v1497 = vlaneseq
        %v1498 = vshrl.u32 %v1497, 7
        %v1499 = vsub.s32 0, %v1498
        %v1500 = vrot.slane %v1495, %v1499
        %v1510 = vunpack.c.l.b16 %v1487
        %v1511 = vunpack.c.l.b16 %v1488
        %v1512 = vunpack.c.l.b16 %v1489
        %v1513 = vunpack.c.l.b16 %v1490
        %v1514 = vunpack.c.l.b16 %v1491
        %v1515 = vunpack.c.l.b16 %v1492
        %v1516 = vunpack.c.l.b16 %v1493
        %v1517 = vunpack.c.l.b16 %v1494
        %v1518 = vpack.c.b16 %v1511, %v1510
        %v1519 = vpack.c.b16 %v1513, %v1512
        %v1520 = vpack.c.b16 %v1515, %v1514
        %v1521 = vpack.c.b16 %v1517, %v1516
        %vm1526 = vcmask 523264
        %v1528 = vsel %vm1526, %v1486, 0
        %1530 = vmatprep.subr.bf16.mxu0 0
        %1531 = vmatpush1.bf16.msra.mxu0 %v1518
        %1532 = vmatprep.subr.bf16.mxu0 0
        %1533 = vmatpush1.bf16.msra.mxu0 %v1519
        %1534 = vmatprep.subr.bf16.mxu0 0
        %1535 = vmatpush1.bf16.msra.mxu0 %v1520
        %1536 = vmatprep.subr.bf16.mxu0 0
        %1537 = vmatpush1.bf16.msra.mxu0 %v1521
        %1538 = vmatprep.subr.bf16.mxu0 0
        %1539 = vmatpush1.bf16.msra.mxu0 0
        %1540 = vmatprep.subr.bf16.mxu0 0
        %1541 = vmatpush1.bf16.msra.mxu0 0
        %1542 = vmatprep.subr.bf16.mxu0 0
        %1543 = vmatpush1.bf16.msra.mxu0 0
        %1544 = vmatprep.subr.bf16.mxu0 0
        %1545 = vmatpush1.bf16.msra.mxu0 0
        %1546 = vmatprep.subr.bf16.mxu0 0
        %1547 = vmatpush1.bf16.msra.mxu0 0
        %1548 = vmatprep.subr.bf16.mxu0 0
        %1549 = vmatpush1.bf16.msra.mxu0 0
        %1550 = vmatprep.subr.bf16.mxu0 0
        %1551 = vmatpush1.bf16.msra.mxu0 0
        %1552 = vmatprep.subr.bf16.mxu0 0
        %1553 = vmatpush1.bf16.msra.mxu0 0
        %1554 = vmatprep.subr.bf16.mxu0 0
        %1555 = vmatpush1.bf16.msra.mxu0 0
        %1556 = vmatprep.subr.bf16.mxu0 0
        %1557 = vmatpush1.bf16.msra.mxu0 0
        %1558 = vmatprep.subr.bf16.mxu0 0
        %1559 = vmatpush1.bf16.msra.mxu0 0
        %1560 = vmatprep.subr.bf16.mxu0 0
        %1561 = vmatpush1.bf16.msra.mxu0 0
        %1562 = vmatprep.mubr.bf16.mxu0 0
        %1563 = vmatmul.mubr.bf16.gmra.mrb[0].mxu0 %v1528
        %v1564 = vpop.f32.mrb[0].mxu0
        %v1565 = vadd.f32 %v1500, %v1564
        %v1566 = vpop.f32.mrb[0].mxu0
        %v1567 = vpop.f32.mrb[0].mxu0
        %v1568 = vpop.f32.mrb[0].mxu0
        %1569 = vdwg.mxu0
        %v1570 = vadd.f32 %v1417, %v1565
        %v1571 = vld [vmem:[%s874] sm:$0x1]
        %v1572 = vld [vmem:[%s877] sm:$0x1]
        %v1573 = vsel %vm911, %v1570, 0.0
        %1574 = vadd.xlane.f32.xlu0 %v1573
        %v1575 = vpop.xlane.xlu0 %1574
        %v1576 = vmul.f32 %v1575, %v1393
        %v1577 = vsub.f32 %v1570, %v1576
        %v1578 = vmul.f32 %v1577, %v1577
        %v1579 = vsel %vm911, %v1578, 0.0
        %1580 = vadd.xlane.f32.xlu0 %v1579
        %v1581 = vpop.xlane.xlu0 %1580
        %v1582 = vmul.f32 %v1581, %v1393
        %v1583 = vadd.f32 %v1582, 1e-05
        %v1584 = vrsqrt.pop %v1583
        %v1585 = vmul.f32 %v1577, %v1584
        %v1587 = vlaneseq
        %v1588 = vshrl.u32 %v1587, 7
        %v1589 = vsub.s32 0, %v1588
        %v1590 = vrot.slane %v1571, %v1589
        %v1592 = vmul.f32 %v1585, %v1590
        %v1594 = vlaneseq
        %v1595 = vshrl.u32 %v1594, 7
        %v1596 = vsub.s32 0, %v1595
        %v1597 = vrot.slane %v1572, %v1596
        %v1599 = vadd.f32 %v1592, %v1597
        %1600 = vst.msk [vmem:[#allocation2] sm:$0xff] %vm911, %v1599
        %p1601 = scmp.eq.s32.totalorder %s47, 1
        // Predicated region
        $region105: #{tpu_custom_call.1} parent=87 // pred_check
          %p1602 = pneg %p1601
        $region106: #{tpu_custom_call.1} parent=87 // pred_check_branch
          %1604 = sbr.rel (%p1602) target = $region108
        $region107: #{tpu_custom_call.1} parent=87 // pred_region
          %1605 = vst.msk [vmem:[%s827] sm:$0xff] %vm911, %v1599
        $region108: #{tpu_custom_call.1} parent=87 // pred_fallthru
          _
        %s1606 = sand.u32 %s504, 1
        %s1607 = scalar_lea.sflag [#allocation7], %s1606
        %s1608 = sand.u32 %s504, 1
        %s1609 = smul.addr %s1608, 8
        %s1610 = scalar_lea.vmem [#allocation11], %s1609
        // Predicated region
        $region109: #{tpu_custom_call.1} parent=87 // pred_check
          %p1611 = pneg %p514
        $region110: #{tpu_custom_call.1} parent=87 // pred_check_branch
          %1613 = sbr.rel (%p1611) target = $region112
        $region111: #{tpu_custom_call.1} parent=87 // pred_region
          %s1615 = ssub.s32 128, 128
          %1616 = vsyncadd %s1607, %s1615
          %s1617 = smul.addr %s46, 128
          %s1618 = scalar_lea.hbm %s18, %s1617
          %s1620 = sshll.u32 %s1610, 4
          %s1621 = int_to_ptr.vmem [resolvable:$true] %s1620
          %1623 = dma.vmem_to_hbm [thread:$0]  %s1621, 128, %s1618, %s1607
        $region112: #{tpu_custom_call.1} parent=87 // pred_fallthru
          _
      $region88: #{tpu_custom_call.1} parent=5 // pred_fallthru
        _
      %p1624 = scmp.le.s32.totalorder 2, %s37
      // Predicated region
      $region113: #{tpu_custom_call.1} parent=5 // pred_check
        %p1625 = pneg %p1624
      $region114: #{tpu_custom_call.1} parent=5 // pred_check_branch
        %1627 = sbr.rel (%p1625) target = $region116
      $region115: #{tpu_custom_call.1} parent=5 // pred_region
        %s1628 = ssub.s32 %s37, 2
        // Predicated region
        $region117: #{tpu_custom_call.1} parent=115 // pred_check
          %p1629 = pneg %p520
        $region118: #{tpu_custom_call.1} parent=115 // pred_check_branch
          %1631 = sbr.rel (%p1629) target = $region120
        $region119: #{tpu_custom_call.1} parent=115 // pred_region
          %s1632 = sand.u32 %s505, 1
          %s1633 = scalar_lea.sflag [#allocation7], %s1632
          %s1634 = sand.u32 %s505, 1
          %s1635 = smul.addr %s1634, 8
          %s1636 = scalar_lea.vmem [#allocation11], %s1635
          %1637 = dma.done %s1633, 128
        $region120: #{tpu_custom_call.1} parent=115 // pred_fallthru
          _
      $region116: #{tpu_custom_call.1} parent=5 // pred_fallthru
        _
    $region6: #{tpu_custom_call.1} parent=1 // loop_footer
      %s41 = sadd.s32 1, %s37
    $region7: #{tpu_custom_call.1} parent=1 // loop_footer_branch
      %36 = sbr.rel target = $region3
    $region8: #{tpu_custom_call.1} parent=1 // loop_exit
      _
    %1638 = vsyncpa [#allocation6], 1
    %s1639 = scalar_lea.sflag [#allocation6], 1
    %1640 = vsyncpa %s1639, 1
    %1641 = vsyncpa [#allocation9], 1
    %s1642 = scalar_lea.sflag [#allocation9], 1
    %1643 = vsyncpa %s1642, 1
    %1644 = vsyncpa [#allocation7], 1
    %s1645 = scalar_lea.sflag [#allocation7], 1
    %1646 = vsyncpa %s1645, 1

</llo_original>
